<compile_context>
chip_gen: v5e
topology: v5e:2x2
jax: 0.10.0
libtpu: 0.0.40
codegen_flags: <defaults>
</compile_context>

<pallas_src>
import functools

import jax
import jax.numpy as jnp
from jax import lax
from jax.experimental import pallas as pl
from jax.experimental.pallas import tpu as pltpu

RELU_CLIP = 20.0                      # torchaudio FullyConnected: relu + hardtanh(0, 20)
_VMEM_LIMIT = 32 * 1024 * 1024        # explicit scoped-VMEM limit; tune per generation
                                      # (<=16/32/32 MiB defaults on v5e/v6e/v7x)

# Tile caps sized for v7x (64 MiB physical VMEM) with bf16 weights; they also
# work on v5e/v6e.  N/K caps are multiples of 128 for the MXU.
_TM_CAP, _TN_CAP, _TK_CAP, _TC_CAP = 256, 512, 512, 256


def _tile(dim, cap):
    """Pick a block size: `cap` if it divides `dim`, else the full dim."""
    return cap if (dim > cap and dim % cap == 0) else dim


# ----------------------------------------------------------------------------
# Kernel 1: tiled linear layer  y = x @ W^T + b  (optional relu+clamp fused).
# Weights arrive pre-transposed (K, N) in bf16; accumulation is f32.
# ----------------------------------------------------------------------------
def _linear_kernel(x_ref, w_ref, b_ref, o_ref, acc_ref, *, relu_clip):
    @pl.when(pl.program_id(2) == 0)
    def _():
        acc_ref[...] = jnp.zeros_like(acc_ref)

    acc_ref[...] += jnp.dot(
        x_ref[...].astype(jnp.bfloat16), w_ref[...],
        preferred_element_type=jnp.float32)

    @pl.when(pl.program_id(2) == pl.num_programs(2) - 1)
    def _():
        y = acc_ref[...] + b_ref[...]
        if relu_clip:
            y = jnp.minimum(jnp.maximum(y, 0.0), RELU_CLIP)
        o_ref[...] = y.astype(o_ref.dtype)


def linear(x, w_t, b, *, relu_clip):
    M, K = x.shape
    K2, N = w_t.shape
    assert K == K2
    tm, tn, tk = _tile(M, _TM_CAP), _tile(N, _TN_CAP), _tile(K, _TK_CAP)
    grid = (M // tm, N // tn, K // tk)
    kernel = functools.partial(_linear_kernel, relu_clip=relu_clip)
    return pl.pallas_call(
        kernel,
        out_shape=jax.ShapeDtypeStruct((M, N), jnp.float32),
        grid_spec=pltpu.PrefetchScalarGridSpec(
            num_scalar_prefetch=0,
            grid=grid,
            in_specs=[
                pl.BlockSpec((tm, tk), lambda i, j, k: (i, k)),   # x tile
                pl.BlockSpec((tk, tn), lambda i, j, k: (k, j)),   # W^T tile (bf16)
                pl.BlockSpec((1, tn), lambda i, j, k: (0, j)),    # bias tile
            ],
            out_specs=pl.BlockSpec((tm, tn), lambda i, j, k: (i, j)),
            scratch_shapes=[pltpu.VMEM((tm, tn), jnp.float32)]),
        compiler_params=pltpu.CompilerParams(
            dimension_semantics=("parallel", "parallel", "arbitrary"),
            vmem_limit_bytes=_VMEM_LIMIT),
    )(x, w_t, b)


# ----------------------------------------------------------------------------
# Kernel 2: bidirectional ReLU-RNN recurrence.
# Inputs are the precomputed input projections xp = x @ W_ih^T + (b_ih+b_hh)
# for each direction.  Both directions run interleaved in one time loop; the
# time axis is chunked over the grid (hidden state carried in scratch).
# ----------------------------------------------------------------------------
def _birnn_kernel(xpf_ref, xpb_ref, whhtf_ref, whhtb_ref,
                  of_ref, ob_ref, hf_scr, hb_scr):
    tc = xpf_ref.shape[0]

    @pl.when(pl.program_id(0) == 0)
    def _():
        hf_scr[...] = jnp.zeros_like(hf_scr)
        hb_scr[...] = jnp.zeros_like(hb_scr)

    whht_f = whhtf_ref[...]   # loop-invariant, already transposed + bf16
    whht_b = whhtb_ref[...]

    @pl.loop(0, tc)
    def _(t):
        # forward direction, local row t
        hf = hf_scr[...]
        pre_f = xpf_ref[pl.ds(t, 1), :] + jnp.dot(
            hf.astype(jnp.bfloat16), whht_f, preferred_element_type=jnp.float32)
        hf_new = jnp.maximum(pre_f, 0.0)
        hf_scr[...] = hf_new
        of_ref[pl.ds(t, 1), :] = hf_new

        # backward direction, local row tc-1-t (global reverse time order)
        tb = tc - 1 - t
        hb = hb_scr[...]
        pre_b = xpb_ref[pl.ds(tb, 1), :] + jnp.dot(
            hb.astype(jnp.bfloat16), whht_b, preferred_element_type=jnp.float32)
        hb_new = jnp.maximum(pre_b, 0.0)
        hb_scr[...] = hb_new
        ob_ref[pl.ds(tb, 1), :] = hb_new


def birnn(xp_f, xp_b, whht_f, whht_b):
    T, H = xp_f.shape
    tc = _tile(T, _TC_CAP)
    nchunks = T // tc
    out_sds = jax.ShapeDtypeStruct((T, H), jnp.float32)
    return pl.pallas_call(
        _birnn_kernel,
        out_shape=(out_sds, out_sds),
        grid_spec=pltpu.PrefetchScalarGridSpec(
            num_scalar_prefetch=0,
            grid=(nchunks,),
            in_specs=[
                pl.BlockSpec((tc, H), lambda c: (c, 0)),                 # xp fwd
                pl.BlockSpec((tc, H), lambda c: (nchunks - 1 - c, 0)),   # xp bwd
                pl.BlockSpec((H, H), lambda c: (0, 0)),                  # W_hh_f^T
                pl.BlockSpec((H, H), lambda c: (0, 0)),                  # W_hh_b^T
            ],
            out_specs=[
                pl.BlockSpec((tc, H), lambda c: (c, 0)),                 # fwd seq
                pl.BlockSpec((tc, H), lambda c: (nchunks - 1 - c, 0)),   # bwd seq
            ],
            scratch_shapes=[pltpu.VMEM((1, H), jnp.float32),
                            pltpu.VMEM((1, H), jnp.float32)]),
        compiler_params=pltpu.CompilerParams(
            dimension_semantics=("arbitrary",),
            vmem_limit_bytes=_VMEM_LIMIT),
    )(xp_f, xp_b, whht_f, whht_b)


# ----------------------------------------------------------------------------
# Kernel 3: head = (fwd + bwd) -> FullyConnected(fc4) -> Linear(H, 1).
# fc4 runs on the MXU (tiled, bf16); the final H->1 projection is a fused VPU
# reduction accumulated across the N tiles (no N=1 MXU pass).
# ----------------------------------------------------------------------------
def _head_kernel(xf_ref, xb_ref, w4_ref, b4_ref, wout_ref, bout_ref, o_ref,
                 accy_ref, accz_ref):
    j = pl.program_id(1)
    k = pl.program_id(2)
    nj = pl.num_programs(1)
    nk = pl.num_programs(2)

    @pl.when(jnp.logical_and(j == 0, k == 0))
    def _():
        accz_ref[...] = jnp.zeros_like(accz_ref)

    @pl.when(k == 0)
    def _():
        accy_ref[...] = jnp.zeros_like(accy_ref)

    x = xf_ref[...] + xb_ref[...]          # fuse fwd+bwd sum of the bi-RNN
    accy_ref[...] += jnp.dot(
        x.astype(jnp.bfloat16), w4_ref[...], preferred_element_type=jnp.float32)

    @pl.when(k == nk - 1)
    def _():
        y = accy_ref[...] + b4_ref[...]
        y = jnp.minimum(jnp.maximum(y, 0.0), RELU_CLIP)
        # final Linear(H -> 1): VPU multiply + lane reduction over this N tile
        accz_ref[...] += jnp.sum(y * wout_ref[...], axis=-1, keepdims=True)

    @pl.when(jnp.logical_and(j == nj - 1, k == nk - 1))
    def _():
        o_ref[...] = accz_ref[...] + bout_ref[...]


def head(x_fwd, x_bwd, w4_t, b4, wout, bout):
    T, H = x_fwd.shape
    tm, tn, tk = _tile(T, _TM_CAP), _tile(H, _TN_CAP), _tile(H, _TK_CAP)
    grid = (T // tm, H // tn, H // tk)
    return pl.pallas_call(
        _head_kernel,
        out_shape=jax.ShapeDtypeStruct((T, 1), jnp.float32),
        grid_spec=pltpu.PrefetchScalarGridSpec(
            num_scalar_prefetch=0,
            grid=grid,
            in_specs=[
                pl.BlockSpec((tm, tk), lambda i, j, k: (i, k)),   # fwd seq
                pl.BlockSpec((tm, tk), lambda i, j, k: (i, k)),   # bwd seq
                pl.BlockSpec((tk, tn), lambda i, j, k: (k, j)),   # W4^T (bf16)
                pl.BlockSpec((1, tn), lambda i, j, k: (0, j)),    # b4
                pl.BlockSpec((1, tn), lambda i, j, k: (0, j)),    # wout row (f32)
                pl.BlockSpec((1, 1), lambda i, j, k: (0, 0)),     # bout
            ],
            out_specs=pl.BlockSpec((tm, 1), lambda i, j, k: (i, 0)),
            scratch_shapes=[pltpu.VMEM((tm, tn), jnp.float32),
                            pltpu.VMEM((tm, 1), jnp.float32)]),
        compiler_params=pltpu.CompilerParams(
            dimension_semantics=("parallel", "arbitrary", "arbitrary"),
            vmem_limit_bytes=_VMEM_LIMIT),
    )(x_fwd, x_bwd, w4_t, b4, wout, bout)


# ----------------------------------------------------------------------------
# Full forward pass.
# ----------------------------------------------------------------------------
@jax.jit
def deepspeech_forward(x, q):
    h = linear(x, q["w1T"], q["b1"], relu_clip=True)
    h = linear(h, q["w2T"], q["b2"], relu_clip=True)
    h = linear(h, q["w3T"], q["b3"], relu_clip=True)
    # RNN input projections (parallel matmuls, pipelined) — bias = b_ih + b_hh.
    xp_f = linear(h, q["wihT_f"], q["b_rnn_f"], relu_clip=False)
    xp_b = linear(h, q["wihT_b"], q["b_rnn_b"], relu_clip=False)
    o_f, o_b = birnn(xp_f, xp_b, q["whhT_f"], q["whhT_b"])
    z = head(o_f, o_b, q["w4T"], q["b4"], q["wout"], q["bout"])
    return jnp.squeeze(z, axis=-1)   # (T,)


# ----------------------------------------------------------------------------
# One-time parameter prep: pre-transpose to (in, out), cast weights to bf16,
# fold RNN biases, reshape biases to (1, N).  (Plain XLA ops, outside kernels.)
# ----------------------------------------------------------------------------
def prepare_params(p):
    bf16 = jnp.bfloat16
    return {
        "w1T": p["w1"].T.astype(bf16), "b1": p["b1"].reshape(1, -1),
        "w2T": p["w2"].T.astype(bf16), "b2": p["b2"].reshape(1, -1),
        "w3T": p["w3"].T.astype(bf16), "b3": p["b3"].reshape(1, -1),
        "wihT_f": p["wih_f"].T.astype(bf16),
        "whhT_f": p["whh_f"].T.astype(bf16),
        "b_rnn_f": (p["bih_f"] + p["bhh_f"]).reshape(1, -1),
        "wihT_b": p["wih_b"].T.astype(bf16),
        "whhT_b": p["whh_b"].T.astype(bf16),
        "b_rnn_b": (p["bih_b"] + p["bhh_b"]).reshape(1, -1),
        "w4T": p["w4"].T.astype(bf16), "b4": p["b4"].reshape(1, -1),
        "wout": p["wout"].reshape(1, -1).astype(jnp.float32),
        "bout": p["bout"].reshape(1, 1),
    }


# ----------------------------------------------------------------------------
# Pure-JAX reference with the same precision policy (bf16 operands, f32 acc).
# ----------------------------------------------------------------------------
def deepspeech_reference(x, q):
    def lin(h, w_t, b, clip_act):
        y = jnp.dot(h.astype(jnp.bfloat16), w_t,
                    preferred_element_type=jnp.float32) + b
        return jnp.clip(y, 0.0, RELU_CLIP) if clip_act else y

    h = lin(x, q["w1T"], q["b1"], True)
    h = lin(h, q["w2T"], q["b2"], True)
    h = lin(h, q["w3T"], q["b3"], True)
    xp_f = lin(h, q["wihT_f"], q["b_rnn_f"], False)
    xp_b = lin(h, q["wihT_b"], q["b_rnn_b"], False)
    H = h.shape[1]

    def run(xp, whht):
        def step(hh, xt):
            pre = xt + jnp.dot(hh.astype(jnp.bfloat16), whht,
                               preferred_element_type=jnp.float32)
            hn = jnp.maximum(pre, 0.0)
            return hn, hn
        _, ys = lax.scan(step, jnp.zeros((H,), jnp.float32), xp)
        return ys

    fwd = run(xp_f, q["whhT_f"])
    bwd = run(xp_b[::-1], q["whhT_b"])[::-1]
    s = fwd + bwd
    y = lin(s, q["w4T"], q["b4"], True)
    return jnp.sum(y * q["wout"], axis=-1) + q["bout"][0, 0]


# ----------------------------------------------------------------------------
# Deterministic PyTorch-style init (uniform(-1/sqrt(fan_in), +1/sqrt(fan_in))).
# ----------------------------------------------------------------------------
def init_params(key, n_feature, n_hidden):
    def uni(k, shape, fan_in):
        bound = 1.0 / jnp.sqrt(jnp.float32(fan_in))
        return jax.random.uniform(k, shape, jnp.float32, -bound, bound)

    keys = jax.random.split(key, 20)
    H, F = n_hidden, n_feature
    return {
        "w1": uni(keys[0], (H, F), F),  "b1": uni(keys[1], (H,), F),
        "w2": uni(keys[2], (H, H), H),  "b2": uni(keys[3], (H,), H),
        "w3": uni(keys[4], (H, H), H),  "b3": uni(keys[5], (H,), H),
        "wih_f": uni(keys[6], (H, H), H), "whh_f": uni(keys[7], (H, H), H),
        "bih_f": uni(keys[8], (H,), H),   "bhh_f": uni(keys[9], (H,), H),
        "wih_b": uni(keys[10], (H, H), H), "whh_b": uni(keys[11], (H, H), H),
        "bih_b": uni(keys[12], (H,), H),   "bhh_b": uni(keys[13], (H,), H),
        "w4": uni(keys[14], (H, H), H), "b4": uni(keys[15], (H,), H),
        "wout": uni(keys[16], (1, H), H), "bout": uni(keys[17], (1,), H),
    }


if __name__ == "__main__":
    # Small shapes consistent with the module: x is (T, n_feature).
    T = 8            # sequence length
    N_FEATURE = 16   # cfg.max_sample_len (scaled down)
    N_HIDDEN = 32    # n_hidden (original 4096, scaled down)

    key = jax.random.PRNGKey(0)
    k_params, k_x = jax.random.split(key)
    raw = init_params(k_params, N_FEATURE, N_HIDDEN)
    params = prepare_params(raw)
    x = jax.random.normal(k_x, (T, N_FEATURE), jnp.float32)

    out = deepspeech_forward(x, params)
    out = jax.block_until_ready(out)

    ref = deepspeech_reference(x, params)
    assert out.shape == (T,), out.shape
    assert jnp.allclose(out, ref, atol=5e-3, rtol=5e-3), (out, ref)

    print("KERNEL_OK")
</pallas_src>

<mosaic_0001>
module attributes {stable_mosaic.version = 11 : i64} {
  func.func @_linear_kernel(%arg0: i32, %arg1: i32, %arg2: i32, %arg3: memref<8x32xf32, #tpu.memory_space<vmem>>, %arg4: memref<32x32xbf16, #tpu.memory_space<vmem>>, %arg5: memref<1x32xf32, #tpu.memory_space<vmem>>, %arg6: memref<8x32xf32, #tpu.memory_space<vmem>>, %arg7: memref<8x32xf32, #tpu.memory_space<vmem>>) attributes {dimension_semantics = [#tpu.dimension_semantics<parallel>, #tpu.dimension_semantics<parallel>, #tpu.dimension_semantics<arbitrary>], iteration_bounds = array<i64: 1, 1, 1>, scalar_prefetch = 0 : i64, scratch_operands = 1 : i64, tpu.core_type = #tpu.core_type<tc>, window_params = [{transform_indices = @transform_0, window_bounds = array<i64: 8, 32>}, {transform_indices = @transform_1, window_bounds = array<i64: 32, 32>}, {transform_indices = @transform_2, window_bounds = array<i64: 1, 32>}, {transform_indices = @transform_3, window_bounds = array<i64: 8, 32>}]} {
    %c0_i32 = arith.constant 0 : i32
    %0 = arith.cmpi eq, %arg2, %c0_i32 : i32
    %1 = arith.extui %0 : i1 to i32
    %c0_i32_0 = arith.constant 0 : i32
    %2 = arith.cmpi ne, %1, %c0_i32_0 : i32
    scf.if %2 {
      %cst_10 = arith.constant 0.000000e+00 : f32
      %13 = vector.broadcast %cst_10 : f32 to vector<8x32xf32>
      %c0_11 = arith.constant 0 : index
      %c0_12 = arith.constant 0 : index
      %14 = vector.load %arg7[%c0_11, %c0_12] : memref<8x32xf32, #tpu.memory_space<vmem>>, vector<8x32xf32>
      tpu.vector_store %arg7[%c0_11, %c0_12], %13 {strides = array<i32>} : memref<8x32xf32, #tpu.memory_space<vmem>>, vector<8x32xf32>,
    } else {
    }
    %c0 = arith.constant 0 : index
    %c0_1 = arith.constant 0 : index
    %3 = vector.load %arg7[%c0, %c0_1] : memref<8x32xf32, #tpu.memory_space<vmem>>, vector<8x32xf32>
    %c0_2 = arith.constant 0 : index
    %c0_3 = arith.constant 0 : index
    %4 = vector.load %arg3[%c0_2, %c0_3] : memref<8x32xf32, #tpu.memory_space<vmem>>, vector<8x32xf32>
    %5 = arith.truncf %4 : vector<8x32xf32> to vector<8x32xbf16>
    %c0_4 = arith.constant 0 : index
    %c0_5 = arith.constant 0 : index
    %6 = vector.load %arg4[%c0_4, %c0_5] : memref<32x32xbf16, #tpu.memory_space<vmem>>, vector<32x32xbf16>
    %cst = arith.constant dense<0.000000e+00> : vector<8x32xf32>
    %7 = tpu.matmul %5, %6, %cst {dimension_numbers = #tpu.dot_dimension_numbers<[1], [0], [0], [1], [0, 0, 1, 1], [], []>} : vector<8x32xbf16>, vector<32x32xbf16>, vector<8x32xf32> -> vector<8x32xf32>
    %8 = arith.addf %3, %7 : vector<8x32xf32>
    %c0_6 = arith.constant 0 : index
    %c0_7 = arith.constant 0 : index
    %9 = vector.load %arg7[%c0_6, %c0_7] : memref<8x32xf32, #tpu.memory_space<vmem>>, vector<8x32xf32>
    tpu.vector_store %arg7[%c0_6, %c0_7], %8 {strides = array<i32>} : memref<8x32xf32, #tpu.memory_space<vmem>>, vector<8x32xf32>,
    %c0_i32_8 = arith.constant 0 : i32
    %10 = arith.cmpi eq, %arg2, %c0_i32_8 : i32
    %11 = arith.extui %10 : i1 to i32
    %c0_i32_9 = arith.constant 0 : i32
    %12 = arith.cmpi ne, %11, %c0_i32_9 : i32
    scf.if %12 {
      %c0_10 = arith.constant 0 : index
      %c0_11 = arith.constant 0 : index
      %13 = vector.load %arg7[%c0_10, %c0_11] : memref<8x32xf32, #tpu.memory_space<vmem>>, vector<8x32xf32>
      %c0_12 = arith.constant 0 : index
      %c0_13 = arith.constant 0 : index
      %14 = vector.load %arg5[%c0_12, %c0_13] : memref<1x32xf32, #tpu.memory_space<vmem>>, vector<1x32xf32>
      %15 = vector.broadcast %14 : vector<1x32xf32> to vector<8x32xf32>
      %16 = arith.addf %13, %15 : vector<8x32xf32>
      %cst_14 = arith.constant 0.000000e+00 : f32
      %17 = vector.broadcast %cst_14 : f32 to vector<8x32xf32>
      %18 = arith.maximumf %16, %17 : vector<8x32xf32>
      %cst_15 = arith.constant 2.000000e+01 : f32
      %19 = vector.broadcast %cst_15 : f32 to vector<8x32xf32>
      %20 = arith.minimumf %18, %19 : vector<8x32xf32>
      %c0_16 = arith.constant 0 : index
      %c0_17 = arith.constant 0 : index
      %21 = vector.load %arg6[%c0_16, %c0_17] : memref<8x32xf32, #tpu.memory_space<vmem>>, vector<8x32xf32>
      tpu.vector_store %arg6[%c0_16, %c0_17], %20 {strides = array<i32>} : memref<8x32xf32, #tpu.memory_space<vmem>>, vector<8x32xf32>,
    } else {
    }
    return
  }
  func.func @transform_0(%arg0: i32, %arg1: i32, %arg2: i32) -> (i32, i32) {
    %c0_i32 = arith.constant 0 : i32
    return %arg0, %arg2 : i32, i32
  }
  func.func @transform_1(%arg0: i32, %arg1: i32, %arg2: i32) -> (i32, i32) {
    %c0_i32 = arith.constant 0 : i32
    return %arg2, %arg1 : i32, i32
  }
  func.func @transform_2(%arg0: i32, %arg1: i32, %arg2: i32) -> (i32, i32) {
    %c0_i32 = arith.constant 0 : i32
    %c0_i32_0 = arith.constant 0 : i32
    return %c0_i32, %arg1 : i32, i32
  }
  func.func @transform_3(%arg0: i32, %arg1: i32, %arg2: i32) -> (i32, i32) {
    %c0_i32 = arith.constant 0 : i32
    return %arg0, %arg1 : i32, i32
  }
}

module attributes {stable_mosaic.version = 11 : i64} {
  func.func @_birnn_kernel(%arg0: i32, %arg1: memref<8x32xf32, #tpu.memory_space<vmem>>, %arg2: memref<8x32xf32, #tpu.memory_space<vmem>>, %arg3: memref<32x32xbf16, #tpu.memory_space<vmem>>, %arg4: memref<32x32xbf16, #tpu.memory_space<vmem>>, %arg5: memref<8x32xf32, #tpu.memory_space<vmem>>, %arg6: memref<8x32xf32, #tpu.memory_space<vmem>>, %arg7: memref<1x32xf32, #tpu.memory_space<vmem>>, %arg8: memref<1x32xf32, #tpu.memory_space<vmem>>) attributes {dimension_semantics = [#tpu.dimension_semantics<arbitrary>], iteration_bounds = array<i64: 1>, scalar_prefetch = 0 : i64, scratch_operands = 2 : i64, tpu.core_type = #tpu.core_type<tc>, window_params = [{transform_indices = @transform_0, window_bounds = array<i64: 8, 32>}, {transform_indices = @transform_1, window_bounds = array<i64: 8, 32>}, {pipeline_mode = #tpu.pipeline_mode<synchronous>, transform_indices = @transform_2, window_bounds = array<i64: 32, 32>}, {pipeline_mode = #tpu.pipeline_mode<synchronous>, transform_indices = @transform_3, window_bounds = array<i64: 32, 32>}, {transform_indices = @transform_4, window_bounds = array<i64: 8, 32>}, {transform_indices = @transform_5, window_bounds = array<i64: 8, 32>}]} {
    %c0_i32 = arith.constant 0 : i32
    %0 = arith.cmpi eq, %arg0, %c0_i32 : i32
    %1 = arith.extui %0 : i1 to i32
    %c0_i32_0 = arith.constant 0 : i32
    %2 = arith.cmpi ne, %1, %c0_i32_0 : i32
    scf.if %2 {
      %cst = arith.constant 0.000000e+00 : f32
      %6 = vector.broadcast %cst : f32 to vector<1x32xf32>
      %c0_6 = arith.constant 0 : index
      %c0_7 = arith.constant 0 : index
      %7 = vector.load %arg7[%c0_6, %c0_7] : memref<1x32xf32, #tpu.memory_space<vmem>>, vector<1x32xf32>
      tpu.vector_store %arg7[%c0_6, %c0_7], %6 {strides = array<i32>} : memref<1x32xf32, #tpu.memory_space<vmem>>, vector<1x32xf32>,
      %cst_8 = arith.constant 0.000000e+00 : f32
      %8 = vector.broadcast %cst_8 : f32 to vector<1x32xf32>
      %c0_9 = arith.constant 0 : index
      %c0_10 = arith.constant 0 : index
      %9 = vector.load %arg8[%c0_9, %c0_10] : memref<1x32xf32, #tpu.memory_space<vmem>>, vector<1x32xf32>
      tpu.vector_store %arg8[%c0_9, %c0_10], %8 {strides = array<i32>} : memref<1x32xf32, #tpu.memory_space<vmem>>, vector<1x32xf32>,
    } else {
    }
    %c0 = arith.constant 0 : index
    %c0_1 = arith.constant 0 : index
    %3 = vector.load %arg3[%c0, %c0_1] : memref<32x32xbf16, #tpu.memory_space<vmem>>, vector<32x32xbf16>
    %c0_2 = arith.constant 0 : index
    %c0_3 = arith.constant 0 : index
    %4 = vector.load %arg4[%c0_2, %c0_3] : memref<32x32xbf16, #tpu.memory_space<vmem>>, vector<32x32xbf16>
    %c0_i32_4 = arith.constant 0 : i32
    %c8_i32 = arith.constant 8 : i32
    %5 = arith.addi %c0_i32_4, %c8_i32 : i32
    %c1_i32 = arith.constant 1 : i32
    scf.for %arg9 = %c0_i32_4 to %5 step %c1_i32  : i32 {
      %c1_i32_6 = arith.constant 1 : i32
      %6 = arith.muli %arg9, %c1_i32_6 : i32
      %c0_i32_7 = arith.constant 0 : i32
      %7 = arith.addi %c0_i32_7, %6 : i32
      %c0_8 = arith.constant 0 : index
      %c0_9 = arith.constant 0 : index
      %8 = vector.load %arg7[%c0_8, %c0_9] : memref<1x32xf32, #tpu.memory_space<vmem>>, vector<1x32xf32>
      %9 = arith.index_cast %7 : i32 to index
      %c0_10 = arith.constant 0 : index
      %10 = vector.load %arg1[%9, %c0_10] : memref<8x32xf32, #tpu.memory_space<vmem>>, vector<1x32xf32>
      %11 = arith.truncf %8 : vector<1x32xf32> to vector<1x32xbf16>
      %cst = arith.constant dense<0.000000e+00> : vector<1x32xf32>
      %12 = tpu.matmul %11, %3, %cst {dimension_numbers = #tpu.dot_dimension_numbers<[1], [0], [0], [1], [0, 0, 1, 1], [], []>} : vector<1x32xbf16>, vector<32x32xbf16>, vector<1x32xf32> -> vector<1x32xf32>
      %13 = arith.addf %10, %12 : vector<1x32xf32>
      %cst_11 = arith.constant 0.000000e+00 : f32
      %14 = vector.broadcast %cst_11 : f32 to vector<1x32xf32>
      %15 = arith.maximumf %13, %14 : vector<1x32xf32>
      %c0_12 = arith.constant 0 : index
      %c0_13 = arith.constant 0 : index
      %16 = vector.load %arg7[%c0_12, %c0_13] : memref<1x32xf32, #tpu.memory_space<vmem>>, vector<1x32xf32>
      tpu.vector_store %arg7[%c0_12, %c0_13], %15 {strides = array<i32>} : memref<1x32xf32, #tpu.memory_space<vmem>>, vector<1x32xf32>,
      %17 = arith.index_cast %7 : i32 to index
      %c0_14 = arith.constant 0 : index
      %18 = vector.load %arg5[%17, %c0_14] : memref<8x32xf32, #tpu.memory_space<vmem>>, vector<1x32xf32>
      tpu.vector_store %arg5[%17, %c0_14], %15 {strides = array<i32>} : memref<8x32xf32, #tpu.memory_space<vmem>>, vector<1x32xf32>,
      %c7_i32 = arith.constant 7 : i32
      %19 = arith.subi %c7_i32, %7 : i32
      %c0_15 = arith.constant 0 : index
      %c0_16 = arith.constant 0 : index
      %20 = vector.load %arg8[%c0_15, %c0_16] : memref<1x32xf32, #tpu.memory_space<vmem>>, vector<1x32xf32>
      %21 = arith.index_cast %19 : i32 to index
      %c0_17 = arith.constant 0 : index
      %22 = vector.load %arg2[%21, %c0_17] : memref<8x32xf32, #tpu.memory_space<vmem>>, vector<1x32xf32>
      %23 = arith.truncf %20 : vector<1x32xf32> to vector<1x32xbf16>
      %cst_18 = arith.constant dense<0.000000e+00> : vector<1x32xf32>
      %24 = tpu.matmul %23, %4, %cst_18 {dimension_numbers = #tpu.dot_dimension_numbers<[1], [0], [0], [1], [0, 0, 1, 1], [], []>} : vector<1x32xbf16>, vector<32x32xbf16>, vector<1x32xf32> -> vector<1x32xf32>
      %25 = arith.addf %22, %24 : vector<1x32xf32>
      %cst_19 = arith.constant 0.000000e+00 : f32
      %26 = vector.broadcast %cst_19 : f32 to vector<1x32xf32>
      %27 = arith.maximumf %25, %26 : vector<1x32xf32>
      %c0_20 = arith.constant 0 : index
      %c0_21 = arith.constant 0 : index
      %28 = vector.load %arg8[%c0_20, %c0_21] : memref<1x32xf32, #tpu.memory_space<vmem>>, vector<1x32xf32>
      tpu.vector_store %arg8[%c0_20, %c0_21], %27 {strides = array<i32>} : memref<1x32xf32, #tpu.memory_space<vmem>>, vector<1x32xf32>,
      %29 = arith.index_cast %19 : i32 to index
      %c0_22 = arith.constant 0 : index
      %30 = vector.load %arg6[%29, %c0_22] : memref<8x32xf32, #tpu.memory_space<vmem>>, vector<1x32xf32>
      tpu.vector_store %arg6[%29, %c0_22], %27 {strides = array<i32>} : memref<8x32xf32, #tpu.memory_space<vmem>>, vector<1x32xf32>,
    }
    %c8_i32_5 = arith.constant 8 : i32
    return
  }
  func.func @transform_0(%arg0: i32) -> (i32, i32) {
    %c0_i32 = arith.constant 0 : i32
    %c0_i32_0 = arith.constant 0 : i32
    return %arg0, %c0_i32 : i32, i32
  }
  func.func @transform_1(%arg0: i32) -> (i32, i32) {
    %c0_i32 = arith.constant 0 : i32
    %0 = arith.subi %c0_i32, %arg0 : i32
    %c0_i32_0 = arith.constant 0 : i32
    %c0_i32_1 = arith.constant 0 : i32
    return %0, %c0_i32_0 : i32, i32
  }
  func.func @transform_2(%arg0: i32) -> (i32, i32) {
    %c0_i32 = arith.constant 0 : i32
    %c0_i32_0 = arith.constant 0 : i32
    %c0_i32_1 = arith.constant 0 : i32
    return %c0_i32, %c0_i32_0 : i32, i32
  }
  func.func @transform_3(%arg0: i32) -> (i32, i32) {
    %c0_i32 = arith.constant 0 : i32
    %c0_i32_0 = arith.constant 0 : i32
    %c0_i32_1 = arith.constant 0 : i32
    return %c0_i32, %c0_i32_0 : i32, i32
  }
  func.func @transform_4(%arg0: i32) -> (i32, i32) {
    %c0_i32 = arith.constant 0 : i32
    %c0_i32_0 = arith.constant 0 : i32
    return %arg0, %c0_i32 : i32, i32
  }
  func.func @transform_5(%arg0: i32) -> (i32, i32) {
    %c0_i32 = arith.constant 0 : i32
    %0 = arith.subi %c0_i32, %arg0 : i32
    %c0_i32_0 = arith.constant 0 : i32
    %c0_i32_1 = arith.constant 0 : i32
    return %0, %c0_i32_0 : i32, i32
  }
}

module attributes {stable_mosaic.version = 11 : i64} {
  func.func @_linear_kernel(%arg0: i32, %arg1: i32, %arg2: i32, %arg3: memref<8x32xf32, #tpu.memory_space<vmem>>, %arg4: memref<32x32xbf16, #tpu.memory_space<vmem>>, %arg5: memref<1x32xf32, #tpu.memory_space<vmem>>, %arg6: memref<8x32xf32, #tpu.memory_space<vmem>>, %arg7: memref<8x32xf32, #tpu.memory_space<vmem>>) attributes {dimension_semantics = [#tpu.dimension_semantics<parallel>, #tpu.dimension_semantics<parallel>, #tpu.dimension_semantics<arbitrary>], iteration_bounds = array<i64: 1, 1, 1>, scalar_prefetch = 0 : i64, scratch_operands = 1 : i64, tpu.core_type = #tpu.core_type<tc>, window_params = [{transform_indices = @transform_0, window_bounds = array<i64: 8, 32>}, {transform_indices = @transform_1, window_bounds = array<i64: 32, 32>}, {transform_indices = @transform_2, window_bounds = array<i64: 1, 32>}, {transform_indices = @transform_3, window_bounds = array<i64: 8, 32>}]} {
    %c0_i32 = arith.constant 0 : i32
    %0 = arith.cmpi eq, %arg2, %c0_i32 : i32
    %1 = arith.extui %0 : i1 to i32
    %c0_i32_0 = arith.constant 0 : i32
    %2 = arith.cmpi ne, %1, %c0_i32_0 : i32
    scf.if %2 {
      %cst_10 = arith.constant 0.000000e+00 : f32
      %13 = vector.broadcast %cst_10 : f32 to vector<8x32xf32>
      %c0_11 = arith.constant 0 : index
      %c0_12 = arith.constant 0 : index
      %14 = vector.load %arg7[%c0_11, %c0_12] : memref<8x32xf32, #tpu.memory_space<vmem>>, vector<8x32xf32>
      tpu.vector_store %arg7[%c0_11, %c0_12], %13 {strides = array<i32>} : memref<8x32xf32, #tpu.memory_space<vmem>>, vector<8x32xf32>,
    } else {
    }
    %c0 = arith.constant 0 : index
    %c0_1 = arith.constant 0 : index
    %3 = vector.load %arg7[%c0, %c0_1] : memref<8x32xf32, #tpu.memory_space<vmem>>, vector<8x32xf32>
    %c0_2 = arith.constant 0 : index
    %c0_3 = arith.constant 0 : index
    %4 = vector.load %arg3[%c0_2, %c0_3] : memref<8x32xf32, #tpu.memory_space<vmem>>, vector<8x32xf32>
    %5 = arith.truncf %4 : vector<8x32xf32> to vector<8x32xbf16>
    %c0_4 = arith.constant 0 : index
    %c0_5 = arith.constant 0 : index
    %6 = vector.load %arg4[%c0_4, %c0_5] : memref<32x32xbf16, #tpu.memory_space<vmem>>, vector<32x32xbf16>
    %cst = arith.constant dense<0.000000e+00> : vector<8x32xf32>
    %7 = tpu.matmul %5, %6, %cst {dimension_numbers = #tpu.dot_dimension_numbers<[1], [0], [0], [1], [0, 0, 1, 1], [], []>} : vector<8x32xbf16>, vector<32x32xbf16>, vector<8x32xf32> -> vector<8x32xf32>
    %8 = arith.addf %3, %7 : vector<8x32xf32>
    %c0_6 = arith.constant 0 : index
    %c0_7 = arith.constant 0 : index
    %9 = vector.load %arg7[%c0_6, %c0_7] : memref<8x32xf32, #tpu.memory_space<vmem>>, vector<8x32xf32>
    tpu.vector_store %arg7[%c0_6, %c0_7], %8 {strides = array<i32>} : memref<8x32xf32, #tpu.memory_space<vmem>>, vector<8x32xf32>,
    %c0_i32_8 = arith.constant 0 : i32
    %10 = arith.cmpi eq, %arg2, %c0_i32_8 : i32
    %11 = arith.extui %10 : i1 to i32
    %c0_i32_9 = arith.constant 0 : i32
    %12 = arith.cmpi ne, %11, %c0_i32_9 : i32
    scf.if %12 {
      %c0_10 = arith.constant 0 : index
      %c0_11 = arith.constant 0 : index
      %13 = vector.load %arg7[%c0_10, %c0_11] : memref<8x32xf32, #tpu.memory_space<vmem>>, vector<8x32xf32>
      %c0_12 = arith.constant 0 : index
      %c0_13 = arith.constant 0 : index
      %14 = vector.load %arg5[%c0_12, %c0_13] : memref<1x32xf32, #tpu.memory_space<vmem>>, vector<1x32xf32>
      %15 = vector.broadcast %14 : vector<1x32xf32> to vector<8x32xf32>
      %16 = arith.addf %13, %15 : vector<8x32xf32>
      %c0_14 = arith.constant 0 : index
      %c0_15 = arith.constant 0 : index
      %17 = vector.load %arg6[%c0_14, %c0_15] : memref<8x32xf32, #tpu.memory_space<vmem>>, vector<8x32xf32>
      tpu.vector_store %arg6[%c0_14, %c0_15], %16 {strides = array<i32>} : memref<8x32xf32, #tpu.memory_space<vmem>>, vector<8x32xf32>,
    } else {
    }
    return
  }
  func.func @transform_0(%arg0: i32, %arg1: i32, %arg2: i32) -> (i32, i32) {
    %c0_i32 = arith.constant 0 : i32
    return %arg0, %arg2 : i32, i32
  }
  func.func @transform_1(%arg0: i32, %arg1: i32, %arg2: i32) -> (i32, i32) {
    %c0_i32 = arith.constant 0 : i32
    return %arg2, %arg1 : i32, i32
  }
  func.func @transform_2(%arg0: i32, %arg1: i32, %arg2: i32) -> (i32, i32) {
    %c0_i32 = arith.constant 0 : i32
    %c0_i32_0 = arith.constant 0 : i32
    return %c0_i32, %arg1 : i32, i32
  }
  func.func @transform_3(%arg0: i32, %arg1: i32, %arg2: i32) -> (i32, i32) {
    %c0_i32 = arith.constant 0 : i32
    return %arg0, %arg1 : i32, i32
  }
}

module attributes {stable_mosaic.version = 11 : i64} {
  func.func @_linear_kernel(%arg0: i32, %arg1: i32, %arg2: i32, %arg3: memref<8x16xf32, #tpu.memory_space<vmem>>, %arg4: memref<16x32xbf16, #tpu.memory_space<vmem>>, %arg5: memref<1x32xf32, #tpu.memory_space<vmem>>, %arg6: memref<8x32xf32, #tpu.memory_space<vmem>>, %arg7: memref<8x32xf32, #tpu.memory_space<vmem>>) attributes {dimension_semantics = [#tpu.dimension_semantics<parallel>, #tpu.dimension_semantics<parallel>, #tpu.dimension_semantics<arbitrary>], iteration_bounds = array<i64: 1, 1, 1>, scalar_prefetch = 0 : i64, scratch_operands = 1 : i64, tpu.core_type = #tpu.core_type<tc>, window_params = [{transform_indices = @transform_0, window_bounds = array<i64: 8, 16>}, {transform_indices = @transform_1, window_bounds = array<i64: 16, 32>}, {transform_indices = @transform_2, window_bounds = array<i64: 1, 32>}, {transform_indices = @transform_3, window_bounds = array<i64: 8, 32>}]} {
    %c0_i32 = arith.constant 0 : i32
    %0 = arith.cmpi eq, %arg2, %c0_i32 : i32
    %1 = arith.extui %0 : i1 to i32
    %c0_i32_0 = arith.constant 0 : i32
    %2 = arith.cmpi ne, %1, %c0_i32_0 : i32
    scf.if %2 {
      %cst_10 = arith.constant 0.000000e+00 : f32
      %13 = vector.broadcast %cst_10 : f32 to vector<8x32xf32>
      %c0_11 = arith.constant 0 : index
      %c0_12 = arith.constant 0 : index
      %14 = vector.load %arg7[%c0_11, %c0_12] : memref<8x32xf32, #tpu.memory_space<vmem>>, vector<8x32xf32>
      tpu.vector_store %arg7[%c0_11, %c0_12], %13 {strides = array<i32>} : memref<8x32xf32, #tpu.memory_space<vmem>>, vector<8x32xf32>,
    } else {
    }
    %c0 = arith.constant 0 : index
    %c0_1 = arith.constant 0 : index
    %3 = vector.load %arg7[%c0, %c0_1] : memref<8x32xf32, #tpu.memory_space<vmem>>, vector<8x32xf32>
    %c0_2 = arith.constant 0 : index
    %c0_3 = arith.constant 0 : index
    %4 = vector.load %arg3[%c0_2, %c0_3] : memref<8x16xf32, #tpu.memory_space<vmem>>, vector<8x16xf32>
    %5 = arith.truncf %4 : vector<8x16xf32> to vector<8x16xbf16>
    %c0_4 = arith.constant 0 : index
    %c0_5 = arith.constant 0 : index
    %6 = vector.load %arg4[%c0_4, %c0_5] : memref<16x32xbf16, #tpu.memory_space<vmem>>, vector<16x32xbf16>
    %cst = arith.constant dense<0.000000e+00> : vector<8x32xf32>
    %7 = tpu.matmul %5, %6, %cst {dimension_numbers = #tpu.dot_dimension_numbers<[1], [0], [0], [1], [0, 0, 1, 1], [], []>} : vector<8x16xbf16>, vector<16x32xbf16>, vector<8x32xf32> -> vector<8x32xf32>
    %8 = arith.addf %3, %7 : vector<8x32xf32>
    %c0_6 = arith.constant 0 : index
    %c0_7 = arith.constant 0 : index
    %9 = vector.load %arg7[%c0_6, %c0_7] : memref<8x32xf32, #tpu.memory_space<vmem>>, vector<8x32xf32>
    tpu.vector_store %arg7[%c0_6, %c0_7], %8 {strides = array<i32>} : memref<8x32xf32, #tpu.memory_space<vmem>>, vector<8x32xf32>,
    %c0_i32_8 = arith.constant 0 : i32
    %10 = arith.cmpi eq, %arg2, %c0_i32_8 : i32
    %11 = arith.extui %10 : i1 to i32
    %c0_i32_9 = arith.constant 0 : i32
    %12 = arith.cmpi ne, %11, %c0_i32_9 : i32
    scf.if %12 {
      %c0_10 = arith.constant 0 : index
      %c0_11 = arith.constant 0 : index
      %13 = vector.load %arg7[%c0_10, %c0_11] : memref<8x32xf32, #tpu.memory_space<vmem>>, vector<8x32xf32>
      %c0_12 = arith.constant 0 : index
      %c0_13 = arith.constant 0 : index
      %14 = vector.load %arg5[%c0_12, %c0_13] : memref<1x32xf32, #tpu.memory_space<vmem>>, vector<1x32xf32>
      %15 = vector.broadcast %14 : vector<1x32xf32> to vector<8x32xf32>
      %16 = arith.addf %13, %15 : vector<8x32xf32>
      %cst_14 = arith.constant 0.000000e+00 : f32
      %17 = vector.broadcast %cst_14 : f32 to vector<8x32xf32>
      %18 = arith.maximumf %16, %17 : vector<8x32xf32>
      %cst_15 = arith.constant 2.000000e+01 : f32
      %19 = vector.broadcast %cst_15 : f32 to vector<8x32xf32>
      %20 = arith.minimumf %18, %19 : vector<8x32xf32>
      %c0_16 = arith.constant 0 : index
      %c0_17 = arith.constant 0 : index
      %21 = vector.load %arg6[%c0_16, %c0_17] : memref<8x32xf32, #tpu.memory_space<vmem>>, vector<8x32xf32>
      tpu.vector_store %arg6[%c0_16, %c0_17], %20 {strides = array<i32>} : memref<8x32xf32, #tpu.memory_space<vmem>>, vector<8x32xf32>,
    } else {
    }
    return
  }
  func.func @transform_0(%arg0: i32, %arg1: i32, %arg2: i32) -> (i32, i32) {
    %c0_i32 = arith.constant 0 : i32
    return %arg0, %arg2 : i32, i32
  }
  func.func @transform_1(%arg0: i32, %arg1: i32, %arg2: i32) -> (i32, i32) {
    %c0_i32 = arith.constant 0 : i32
    return %arg2, %arg1 : i32, i32
  }
  func.func @transform_2(%arg0: i32, %arg1: i32, %arg2: i32) -> (i32, i32) {
    %c0_i32 = arith.constant 0 : i32
    %c0_i32_0 = arith.constant 0 : i32
    return %c0_i32, %arg1 : i32, i32
  }
  func.func @transform_3(%arg0: i32, %arg1: i32, %arg2: i32) -> (i32, i32) {
    %c0_i32 = arith.constant 0 : i32
    return %arg0, %arg1 : i32, i32
  }
}

module attributes {stable_mosaic.version = 11 : i64} {
  func.func @_head_kernel(%arg0: i32, %arg1: i32, %arg2: i32, %arg3: memref<8x32xf32, #tpu.memory_space<vmem>>, %arg4: memref<8x32xf32, #tpu.memory_space<vmem>>, %arg5: memref<32x32xbf16, #tpu.memory_space<vmem>>, %arg6: memref<1x32xf32, #tpu.memory_space<vmem>>, %arg7: memref<1x32xf32, #tpu.memory_space<vmem>>, %arg8: memref<1x1xf32, #tpu.memory_space<vmem>>, %arg9: memref<8x1xf32, #tpu.memory_space<vmem>>, %arg10: memref<8x32xf32, #tpu.memory_space<vmem>>, %arg11: memref<8x1xf32, #tpu.memory_space<vmem>>) attributes {dimension_semantics = [#tpu.dimension_semantics<parallel>, #tpu.dimension_semantics<arbitrary>, #tpu.dimension_semantics<arbitrary>], iteration_bounds = array<i64: 1, 1, 1>, scalar_prefetch = 0 : i64, scratch_operands = 2 : i64, tpu.core_type = #tpu.core_type<tc>, window_params = [{transform_indices = @transform_0, window_bounds = array<i64: 8, 32>}, {transform_indices = @transform_1, window_bounds = array<i64: 8, 32>}, {transform_indices = @transform_2, window_bounds = array<i64: 32, 32>}, {transform_indices = @transform_3, window_bounds = array<i64: 1, 32>}, {transform_indices = @transform_4, window_bounds = array<i64: 1, 32>}, {pipeline_mode = #tpu.pipeline_mode<synchronous>, transform_indices = @transform_5, window_bounds = array<i64: 1, 1>}, {transform_indices = @transform_6, window_bounds = array<i64: 8, 1>}]} {
    %c0_i32 = arith.constant 0 : i32
    %0 = arith.cmpi eq, %arg1, %c0_i32 : i32
    %c0_i32_0 = arith.constant 0 : i32
    %1 = arith.cmpi eq, %arg2, %c0_i32_0 : i32
    %2 = arith.andi %0, %1 : i1
    %3 = arith.extui %2 : i1 to i32
    %c0_i32_1 = arith.constant 0 : i32
    %4 = arith.cmpi ne, %3, %c0_i32_1 : i32
    scf.if %4 {
      %cst_18 = arith.constant 0.000000e+00 : f32
      %25 = vector.broadcast %cst_18 : f32 to vector<8x1xf32>
      %c0_19 = arith.constant 0 : index
      %c0_20 = arith.constant 0 : index
      %26 = vector.load %arg11[%c0_19, %c0_20] : memref<8x1xf32, #tpu.memory_space<vmem>>, vector<8x1xf32>
      tpu.vector_store %arg11[%c0_19, %c0_20], %25 {strides = array<i32>} : memref<8x1xf32, #tpu.memory_space<vmem>>, vector<8x1xf32>,
    } else {
    }
    %c0_i32_2 = arith.constant 0 : i32
    %5 = arith.cmpi eq, %arg2, %c0_i32_2 : i32
    %6 = arith.extui %5 : i1 to i32
    %c0_i32_3 = arith.constant 0 : i32
    %7 = arith.cmpi ne, %6, %c0_i32_3 : i32
    scf.if %7 {
      %cst_18 = arith.constant 0.000000e+00 : f32
      %25 = vector.broadcast %cst_18 : f32 to vector<8x32xf32>
      %c0_19 = arith.constant 0 : index
      %c0_20 = arith.constant 0 : index
      %26 = vector.load %arg10[%c0_19, %c0_20] : memref<8x32xf32, #tpu.memory_space<vmem>>, vector<8x32xf32>
      tpu.vector_store %arg10[%c0_19, %c0_20], %25 {strides = array<i32>} : memref<8x32xf32, #tpu.memory_space<vmem>>, vector<8x32xf32>,
    } else {
    }
    %c0 = arith.constant 0 : index
    %c0_4 = arith.constant 0 : index
    %8 = vector.load %arg3[%c0, %c0_4] : memref<8x32xf32, #tpu.memory_space<vmem>>, vector<8x32xf32>
    %c0_5 = arith.constant 0 : index
    %c0_6 = arith.constant 0 : index
    %9 = vector.load %arg4[%c0_5, %c0_6] : memref<8x32xf32, #tpu.memory_space<vmem>>, vector<8x32xf32>
    %10 = arith.addf %8, %9 : vector<8x32xf32>
    %c0_7 = arith.constant 0 : index
    %c0_8 = arith.constant 0 : index
    %11 = vector.load %arg10[%c0_7, %c0_8] : memref<8x32xf32, #tpu.memory_space<vmem>>, vector<8x32xf32>
    %12 = arith.truncf %10 : vector<8x32xf32> to vector<8x32xbf16>
    %c0_9 = arith.constant 0 : index
    %c0_10 = arith.constant 0 : index
    %13 = vector.load %arg5[%c0_9, %c0_10] : memref<32x32xbf16, #tpu.memory_space<vmem>>, vector<32x32xbf16>
    %cst = arith.constant dense<0.000000e+00> : vector<8x32xf32>
    %14 = tpu.matmul %12, %13, %cst {dimension_numbers = #tpu.dot_dimension_numbers<[1], [0], [0], [1], [0, 0, 1, 1], [], []>} : vector<8x32xbf16>, vector<32x32xbf16>, vector<8x32xf32> -> vector<8x32xf32>
    %15 = arith.addf %11, %14 : vector<8x32xf32>
    %c0_11 = arith.constant 0 : index
    %c0_12 = arith.constant 0 : index
    %16 = vector.load %arg10[%c0_11, %c0_12] : memref<8x32xf32, #tpu.memory_space<vmem>>, vector<8x32xf32>
    tpu.vector_store %arg10[%c0_11, %c0_12], %15 {strides = array<i32>} : memref<8x32xf32, #tpu.memory_space<vmem>>, vector<8x32xf32>,
    %c0_i32_13 = arith.constant 0 : i32
    %17 = arith.cmpi eq, %arg2, %c0_i32_13 : i32
    %18 = arith.extui %17 : i1 to i32
    %c0_i32_14 = arith.constant 0 : i32
    %19 = arith.cmpi ne, %18, %c0_i32_14 : i32
    scf.if %19 {
      %c0_18 = arith.constant 0 : index
      %c0_19 = arith.constant 0 : index
      %25 = vector.load %arg10[%c0_18, %c0_19] : memref<8x32xf32, #tpu.memory_space<vmem>>, vector<8x32xf32>
      %c0_20 = arith.constant 0 : index
      %c0_21 = arith.constant 0 : index
      %26 = vector.load %arg6[%c0_20, %c0_21] : memref<1x32xf32, #tpu.memory_space<vmem>>, vector<1x32xf32>
      %27 = vector.broadcast %26 : vector<1x32xf32> to vector<8x32xf32>
      %28 = arith.addf %25, %27 : vector<8x32xf32>
      %cst_22 = arith.constant 0.000000e+00 : f32
      %29 = vector.broadcast %cst_22 : f32 to vector<8x32xf32>
      %30 = arith.maximumf %28, %29 : vector<8x32xf32>
      %cst_23 = arith.constant 2.000000e+01 : f32
      %31 = vector.broadcast %cst_23 : f32 to vector<8x32xf32>
      %32 = arith.minimumf %30, %31 : vector<8x32xf32>
      %c0_24 = arith.constant 0 : index
      %c0_25 = arith.constant 0 : index
      %33 = vector.load %arg11[%c0_24, %c0_25] : memref<8x1xf32, #tpu.memory_space<vmem>>, vector<8x1xf32>
      %c0_26 = arith.constant 0 : index
      %c0_27 = arith.constant 0 : index
      %34 = vector.load %arg7[%c0_26, %c0_27] : memref<1x32xf32, #tpu.memory_space<vmem>>, vector<1x32xf32>
      %35 = vector.broadcast %34 : vector<1x32xf32> to vector<8x32xf32>
      %36 = arith.mulf %32, %35 : vector<8x32xf32>
      %cst_28 = arith.constant dense<0.000000e+00> : vector<8xf32>
      %37 = vector.multi_reduction <add>, %36, %cst_28 [1] : vector<8x32xf32> to vector<8xf32>
      %38 = vector.shape_cast %37 : vector<8xf32> to vector<8x1xf32>
      %39 = arith.addf %33, %38 : vector<8x1xf32>
      %c0_29 = arith.constant 0 : index
      %c0_30 = arith.constant 0 : index
      %40 = vector.load %arg11[%c0_29, %c0_30] : memref<8x1xf32, #tpu.memory_space<vmem>>, vector<8x1xf32>
      tpu.vector_store %arg11[%c0_29, %c0_30], %39 {strides = array<i32>} : memref<8x1xf32, #tpu.memory_space<vmem>>, vector<8x1xf32>,
    } else {
    }
    %c0_i32_15 = arith.constant 0 : i32
    %20 = arith.cmpi eq, %arg1, %c0_i32_15 : i32
    %c0_i32_16 = arith.constant 0 : i32
    %21 = arith.cmpi eq, %arg2, %c0_i32_16 : i32
    %22 = arith.andi %20, %21 : i1
    %23 = arith.extui %22 : i1 to i32
    %c0_i32_17 = arith.constant 0 : i32
    %24 = arith.cmpi ne, %23, %c0_i32_17 : i32
    scf.if %24 {
      %c0_18 = arith.constant 0 : index
      %c0_19 = arith.constant 0 : index
      %25 = vector.load %arg11[%c0_18, %c0_19] : memref<8x1xf32, #tpu.memory_space<vmem>>, vector<8x1xf32>
      %c0_20 = arith.constant 0 : index
      %c0_21 = arith.constant 0 : index
      %26 = vector.load %arg8[%c0_20, %c0_21] : memref<1x1xf32, #tpu.memory_space<vmem>>, vector<1x1xf32>
      %27 = vector.broadcast %26 : vector<1x1xf32> to vector<8x1xf32>
      %28 = arith.addf %25, %27 : vector<8x1xf32>
      %c0_22 = arith.constant 0 : index
      %c0_23 = arith.constant 0 : index
      %29 = vector.load %arg9[%c0_22, %c0_23] : memref<8x1xf32, #tpu.memory_space<vmem>>, vector<8x1xf32>
      tpu.vector_store %arg9[%c0_22, %c0_23], %28 {strides = array<i32>} : memref<8x1xf32, #tpu.memory_space<vmem>>, vector<8x1xf32>,
    } else {
    }
    return
  }
  func.func @transform_0(%arg0: i32, %arg1: i32, %arg2: i32) -> (i32, i32) {
    %c0_i32 = arith.constant 0 : i32
    return %arg0, %arg2 : i32, i32
  }
  func.func @transform_1(%arg0: i32, %arg1: i32, %arg2: i32) -> (i32, i32) {
    %c0_i32 = arith.constant 0 : i32
    return %arg0, %arg2 : i32, i32
  }
  func.func @transform_2(%arg0: i32, %arg1: i32, %arg2: i32) -> (i32, i32) {
    %c0_i32 = arith.constant 0 : i32
    return %arg2, %arg1 : i32, i32
  }
  func.func @transform_3(%arg0: i32, %arg1: i32, %arg2: i32) -> (i32, i32) {
    %c0_i32 = arith.constant 0 : i32
    %c0_i32_0 = arith.constant 0 : i32
    return %c0_i32, %arg1 : i32, i32
  }
  func.func @transform_4(%arg0: i32, %arg1: i32, %arg2: i32) -> (i32, i32) {
    %c0_i32 = arith.constant 0 : i32
    %c0_i32_0 = arith.constant 0 : i32
    return %c0_i32, %arg1 : i32, i32
  }
  func.func @transform_5(%arg0: i32, %arg1: i32, %arg2: i32) -> (i32, i32) {
    %c0_i32 = arith.constant 0 : i32
    %c0_i32_0 = arith.constant 0 : i32
    %c0_i32_1 = arith.constant 0 : i32
    return %c0_i32, %c0_i32_0 : i32, i32
  }
  func.func @transform_6(%arg0: i32, %arg1: i32, %arg2: i32) -> (i32, i32) {
    %c0_i32 = arith.constant 0 : i32
    %c0_i32_0 = arith.constant 0 : i32
    return %arg0, %c0_i32 : i32, i32
  }
}

</mosaic_0001>

<llo_original>
// kernel: deepspeech_forward.10
$region0: #{deepspeech_forward.10}
  #allocation0 [shape = 'u32[]', space=smem, size = 0x4, offset = 0x4, fixed_abs, tag = 'smem constant byte address 0x4 - core index']
  #allocation1 [shape = 'u32[72,128]{1,0:T(1,128)}', space=vmem, size = 0x9000, scoped, tag = 'internal scratch']
  #allocation2 [shape = 'f32[8,32]{1,0:T(8,128)}', space=vmem, size = 0x1000, scoped, tag = 'scratch operand']
  %s0 = inlined_call_operand.vmem [shape: f32[8,32], index: 0, kind: input, shape index: {}]
  %s1 = inlined_call_operand.hbm [shape: bf16[32,32], index: 1, kind: input, shape index: {}]
  %s2 = inlined_call_operand.vmem [shape: f32[1,32], index: 2, kind: input, shape index: {}]
  %s3 = inlined_call_operand.vmem [shape: f32[8,32], index: 3, kind: output, shape index: {}]
  %s4 = sld [smem:[#allocation0]]
  $region34: #{deepspeech_forward.10} parent=0
    _
  %s6 = ssub.s32 1, %s4
  %s7 = scalar_select 0, %s6, %s4
  $region1: #{deepspeech_forward.10} parent=0
    #allocation3 [shape = 'u8[8192]{0}', space=vmem, size = 0x2000, scoped, tag = 'input window, operand 1, single buffered']
    #allocation4 [shape = 's32[1]{0}', space=sflag, size = 0x4, scoped, tag = 'scoped memory for deepspeech_forward.10']
    %8 = vsyncpa [#allocation4], 0
    // Predicated region
    $region2: #{deepspeech_forward.10} parent=1 // pred_check
      _
    $region3: #{deepspeech_forward.10} parent=1 // pred_check_branch
      %10 = sbr.rel (0) target = $region5
    $region4: #{deepspeech_forward.10} parent=1 // pred_region
      _
    $region5: #{deepspeech_forward.10} parent=1 // pred_fallthru
      _
    // Predicated region
    $region6: #{deepspeech_forward.10} parent=1 // pred_check
      _
    $region7: #{deepspeech_forward.10} parent=1 // pred_check_branch
      %12 = sbr.rel (0) target = $region9
    $region8: #{deepspeech_forward.10} parent=1 // pred_region
      %14 = vsyncadd [#allocation4], 0
      %s15 = sshll.u32 %s1, 4
      %s16 = int_to_ptr.hbm [resolvable:$true] %s15
      %s17 = sshll.u32 [#allocation3], 4
      %s18 = int_to_ptr.vmem [resolvable:$true] %s17
      %23 = dma.hbm_to_vmem [thread:$0]  %s16, 256, %s18, [#allocation4], 64, 64, 4
    $region9: #{deepspeech_forward.10} parent=1 // pred_fallthru
      _
    // Predicated region
    $region10: #{deepspeech_forward.10} parent=1 // pred_check
      _
    $region11: #{deepspeech_forward.10} parent=1 // pred_check_branch
      %25 = sbr.rel (0) target = $region13
    $region12: #{deepspeech_forward.10} parent=1 // pred_region
      _
    $region13: #{deepspeech_forward.10} parent=1 // pred_fallthru
      _
    // Predicated region
    $region14: #{deepspeech_forward.10} parent=1 // pred_check
      _
    $region15: #{deepspeech_forward.10} parent=1 // pred_check_branch
      %27 = sbr.rel (0) target = $region17
    $region16: #{deepspeech_forward.10} parent=1 // pred_region
      %29 = dma.done [#allocation4], 256
    $region17: #{deepspeech_forward.10} parent=1 // pred_fallthru
      _
    %p31 = scmp.eq.s32.totalorder 0, 0
    // Predicated region
    $region18: #{deepspeech_forward.10} parent=1 // pred_check
      %p32 = pneg %p31
    $region19: #{deepspeech_forward.10} parent=1 // pred_check_branch
      %34 = sbr.rel (%p32) target = $region21
    $region20: #{deepspeech_forward.10} parent=1 // pred_region
      %vm35 = vcmask 261120
      %36 = vst.msk [vmem:[#allocation2] sm:$0xff] %vm35, 0.0
    $region21: #{deepspeech_forward.10} parent=1 // pred_fallthru
      _
    %v37 = vld [vmem:[#allocation2] sm:$0xff]
    %v38 = vld [vmem:[%s0] sm:$0xff]
    %v39 = vpack.c.bf16 %v38, %v38
    %v40 = vld [vmem:[#allocation3] sm:$0xf]
    %v41 = vld [vmem:[#allocation3 + $0x4] sm:$0xf]
    %v42 = vld [vmem:[#allocation3 + $0x8] sm:$0xf]
    %v43 = vld [vmem:[#allocation3 + $0xc] sm:$0xf]
    %v48 = vunpack.c.l.b16 %v40
    %v49 = vunpack.c.l.b16 %v41
    %v50 = vunpack.c.l.b16 %v42
    %v51 = vunpack.c.l.b16 %v43
    %v52 = vpack.c.b16 %v49, %v48
    %v53 = vpack.c.b16 %v51, %v50
    %vm56 = vcmask 261120
    %v58 = vsel %vm56, %v39, 0
    %60 = vmatpush.bf16.msra.mxu0 0
    %61 = vmatpush.bf16.msra.mxu0 0
    %62 = vmatpush.bf16.msra.mxu0 0
    %63 = vmatpush.bf16.msra.mxu0 0
    %64 = vmatpush.bf16.msra.mxu0 0
    %65 = vmatpush.bf16.msra.mxu0 0
    %66 = vmatpush.bf16.msra.mxu0 %v53
    %67 = vmatpush.bf16.msra.mxu0 %v52
    %68 = vmatmul.bf16.gmra.mxu0 %v58
    %v69 = vpop.f32.mrf.mxu0
    %v70 = vadd.f32 0.0, %v69
    %v71 = vpop.f32.mrf.mxu0
    %72 = vdwg.mxu0
    %v73 = vadd.f32 %v37, %v70
    %74 = vst.msk [vmem:[#allocation2] sm:$0xff] %vm56, %v73
    // Predicated region
    $region22: #{deepspeech_forward.10} parent=1 // pred_check
      %p75 = pneg %p31
    $region23: #{deepspeech_forward.10} parent=1 // pred_check_branch
      %77 = sbr.rel (%p75) target = $region25
    $region24: #{deepspeech_forward.10} parent=1 // pred_region
      %v78 = vld [vmem:[#allocation2] sm:$0xff]
      %v79 = vld [vmem:[%s2] sm:$0x1]
      %v81 = vperm.slane %v79, 0
      %v83 = vadd.f32 %v78, %v81
      %84 = vst.msk [vmem:[%s3] sm:$0xff] %vm56, %v83
    $region25: #{deepspeech_forward.10} parent=1 // pred_fallthru
      _
    // Predicated region
    $region26: #{deepspeech_forward.10} parent=1 // pred_check
      _
    $region27: #{deepspeech_forward.10} parent=1 // pred_check_branch
      %86 = sbr.rel (0) target = $region29
    $region28: #{deepspeech_forward.10} parent=1 // pred_region
      _
    $region29: #{deepspeech_forward.10} parent=1 // pred_fallthru
      _
    // Predicated region
    $region30: #{deepspeech_forward.10} parent=1 // pred_check
      _
    $region31: #{deepspeech_forward.10} parent=1 // pred_check_branch
      %88 = sbr.rel (0) target = $region33
    $region32: #{deepspeech_forward.10} parent=1 // pred_region
      _
    $region33: #{deepspeech_forward.10} parent=1 // pred_fallthru
      _
    %89 = vsyncpa [#allocation4], 1

// kernel: deepspeech_forward.12
$region0: #{deepspeech_forward.12}
  #allocation0 [shape = 'u32[]', space=smem, size = 0x4, offset = 0x4, fixed_abs, tag = 'smem constant byte address 0x4 - core index']
  #allocation1 [shape = 'u32[72,128]{1,0:T(1,128)}', space=vmem, size = 0x9000, scoped, tag = 'internal scratch']
  #allocation2 [shape = 'f32[1,32]{1,0:T(1,128)}', space=vmem, size = 0x200, scoped, tag = 'scratch operand']
  #allocation3 [shape = 'f32[1,32]{1,0:T(1,128)}', space=vmem, size = 0x200, scoped, tag = 'scratch operand']
  %s0 = inlined_call_operand.vmem [shape: f32[8,32], index: 0, kind: input, shape index: {}]
  %s1 = inlined_call_operand.vmem [shape: f32[8,32], index: 1, kind: input, shape index: {}]
  %s2 = inlined_call_operand.hbm [shape: bf16[32,32], index: 2, kind: input, shape index: {}]
  %s3 = inlined_call_operand.hbm [shape: bf16[32,32], index: 3, kind: input, shape index: {}]
  %s4 = inlined_call_operand.vmem [shape: f32[8,32], index: 4, kind: output, shape index: {0}]
  %s5 = inlined_call_operand.vmem [shape: f32[8,32], index: 5, kind: output, shape index: {1}]
  %6 = xla_tuple %s4, %s5
  %s7 = sld [smem:[#allocation0]]
  $region53: #{deepspeech_forward.12} parent=0
    _
  %s9 = ssub.s32 1, %s7
  %s10 = scalar_select 0, %s9, %s7
  $region1: #{deepspeech_forward.12} parent=0
    #allocation4 [shape = 'u8[8192]{0}', space=vmem, size = 0x2000, scoped, tag = 'input window, operand 2, single buffered']
    #allocation5 [shape = 's32[1]{0}', space=sflag, size = 0x4, scoped, tag = 'scoped memory for deepspeech_forward.12']
    #allocation6 [shape = 'u8[8192]{0}', space=vmem, size = 0x2000, scoped, tag = 'input window, operand 3, single buffered']
    #allocation7 [shape = 's32[1]{0}', space=sflag, size = 0x4, scoped, tag = 'scoped memory for deepspeech_forward.12']
    %11 = vsyncpa [#allocation5], 0
    %12 = vsyncpa [#allocation7], 0
    // Predicated region
    $region2: #{deepspeech_forward.12} parent=1 // pred_check
      _
    $region3: #{deepspeech_forward.12} parent=1 // pred_check_branch
      %14 = sbr.rel (0) target = $region5
    $region4: #{deepspeech_forward.12} parent=1 // pred_region
      _
    $region5: #{deepspeech_forward.12} parent=1 // pred_fallthru
      _
    // Predicated region
    $region6: #{deepspeech_forward.12} parent=1 // pred_check
      _
    $region7: #{deepspeech_forward.12} parent=1 // pred_check_branch
      %16 = sbr.rel (0) target = $region9
    $region8: #{deepspeech_forward.12} parent=1 // pred_region
      %s17 = ssub.s32 0, 0
      %p18 = scmp.lt.s32.totalorder %s17, 0
      %s19 = scalar_select %p18, %s17, 0
      %s20 = smul.addr %s19, 8
      %s21 = scalar_lea.vmem %s1, %s20
      %s22 = ssub.s32 0, 0
    $region9: #{deepspeech_forward.12} parent=1 // pred_fallthru
      _
    // Predicated region
    $region10: #{deepspeech_forward.12} parent=1 // pred_check
      _
    $region11: #{deepspeech_forward.12} parent=1 // pred_check_branch
      %24 = sbr.rel (0) target = $region13
    $region12: #{deepspeech_forward.12} parent=1 // pred_region
      %26 = vsyncadd [#allocation5], 0
      %s27 = sshll.u32 %s2, 4
      %s28 = int_to_ptr.hbm [resolvable:$true] %s27
      %s29 = sshll.u32 [#allocation4], 4
      %s30 = int_to_ptr.vmem [resolvable:$true] %s29
      %35 = dma.hbm_to_vmem [thread:$0]  %s28, 256, %s30, [#allocation5], 64, 64, 4
    $region13: #{deepspeech_forward.12} parent=1 // pred_fallthru
      _
    // Predicated region
    $region14: #{deepspeech_forward.12} parent=1 // pred_check
      _
    $region15: #{deepspeech_forward.12} parent=1 // pred_check_branch
      %37 = sbr.rel (0) target = $region17
    $region16: #{deepspeech_forward.12} parent=1 // pred_region
      %39 = vsyncadd [#allocation7], 0
      %s40 = sshll.u32 %s3, 4
      %s41 = int_to_ptr.hbm [resolvable:$true] %s40
      %s42 = sshll.u32 [#allocation6], 4
      %s43 = int_to_ptr.vmem [resolvable:$true] %s42
      %48 = dma.hbm_to_vmem [thread:$0]  %s41, 256, %s43, [#allocation7], 64, 64, 4
    $region17: #{deepspeech_forward.12} parent=1 // pred_fallthru
      _
    // Predicated region
    $region18: #{deepspeech_forward.12} parent=1 // pred_check
      _
    $region19: #{deepspeech_forward.12} parent=1 // pred_check_branch
      %50 = sbr.rel (0) target = $region21
    $region20: #{deepspeech_forward.12} parent=1 // pred_region
      %52 = dma.done [#allocation5], 256
    $region21: #{deepspeech_forward.12} parent=1 // pred_fallthru
      _
    // Predicated region
    $region22: #{deepspeech_forward.12} parent=1 // pred_check
      _
    $region23: #{deepspeech_forward.12} parent=1 // pred_check_branch
      %54 = sbr.rel (0) target = $region25
    $region24: #{deepspeech_forward.12} parent=1 // pred_region
      %56 = dma.done [#allocation7], 256
    $region25: #{deepspeech_forward.12} parent=1 // pred_fallthru
      _
    %s57 = ssub.s32 0, 0
    %p58 = scmp.lt.s32.totalorder %s57, 0
    %s59 = scalar_select %p58, %s57, 0
    %s60 = smul.addr %s59, 8
    %s61 = scalar_lea.vmem %s1, %s60
    %s62 = ssub.s32 0, 0
    %p63 = scmp.lt.s32.totalorder %s62, 0
    %s64 = scalar_select %p63, %s62, 0
    %s65 = smul.addr %s64, 8
    %s66 = scalar_lea.vmem %s5, %s65
    %s67 = ssub.s32 0, 0
    %p68 = scmp.lt.s32.totalorder %s67, 0
    %s69 = scalar_select %p68, %s67, 0
    %s70 = smul.addr %s69, 8
    %s71 = scalar_lea.vmem %s1, %s70
    %s72 = ssub.s32 0, 0
    %s73 = ssub.s32 0, 0
    %p74 = scmp.lt.s32.totalorder %s73, 0
    %s75 = scalar_select %p74, %s73, 0
    %s76 = smul.addr %s75, 8
    %s77 = scalar_lea.vmem %s5, %s76
    %s78 = ssub.s32 0, 0
    %p80 = scmp.eq.s32.totalorder 0, 0
    // Predicated region
    $region26: #{deepspeech_forward.12} parent=1 // pred_check
      %p81 = pneg %p80
    $region27: #{deepspeech_forward.12} parent=1 // pred_check_branch
      %83 = sbr.rel (%p81) target = $region29
    $region28: #{deepspeech_forward.12} parent=1 // pred_region
      %vm84 = vcmask 253952
      %85 = vst.msk [vmem:[#allocation2] sm:$0x1] %vm84, 0.0
      %86 = vst.msk [vmem:[#allocation3] sm:$0x1] %vm84, 0.0
    $region29: #{deepspeech_forward.12} parent=1 // pred_fallthru
      _
    %v87 = vld [vmem:[#allocation4] sm:$0xf]
    %v88 = vld [vmem:[#allocation4 + $0x4] sm:$0xf]
    %v89 = vld [vmem:[#allocation4 + $0x8] sm:$0xf]
    %v90 = vld [vmem:[#allocation4 + $0xc] sm:$0xf]
    %v91 = vld [vmem:[#allocation6] sm:$0xf]
    %v92 = vld [vmem:[#allocation6 + $0x4] sm:$0xf]
    %v93 = vld [vmem:[#allocation6 + $0x8] sm:$0xf]
    %v94 = vld [vmem:[#allocation6 + $0xc] sm:$0xf]
    loop: start=0, step=1, limit=8
    $region30: #{deepspeech_forward.12} parent=1 // loop_pre_header
      _
    $region31: #{deepspeech_forward.12} parent=1 // loop_header
      %s96 = sphi 0, %s100
      %p97 = scmp.ge.s32.totalorder %s96, 8
    $region32: #{deepspeech_forward.12} parent=1 // loop_header_branch
      %99 = sbr.rel (%p97) target = $region36
    $region33: #{deepspeech_forward.12} parent=1 // loop_body
      %v101 = vld [vmem:[#allocation2] sm:$0x1]
      %s102 = scalar_lea.vmem %s0, %s96
      %v103 = vld [vmem:[%s102] sm:$0x1]
      %v104 = vpack.c.bf16 %v101, %v101
      %v109 = vunpack.c.l.b16 %v87
      %v110 = vunpack.c.l.b16 %v88
      %v111 = vunpack.c.l.b16 %v89
      %v112 = vunpack.c.l.b16 %v90
      %v113 = vpack.c.b16 %v110, %v109
      %v114 = vpack.c.b16 %v112, %v111
      %vm117 = vcmask 261120
      %v119 = vsel %vm117, %v104, 0
      %121 = vmatpush.bf16.msra.mxu0 0
      %122 = vmatpush.bf16.msra.mxu0 0
      %123 = vmatpush.bf16.msra.mxu0 0
      %124 = vmatpush.bf16.msra.mxu0 0
      %125 = vmatpush.bf16.msra.mxu0 0
      %126 = vmatpush.bf16.msra.mxu0 0
      %127 = vmatpush.bf16.msra.mxu0 %v114
      %128 = vmatpush.bf16.msra.mxu0 %v113
      %129 = vmatmul.bf16.gmra.mxu0 %v119
      %v130 = vpop.f32.mrf.mxu0
      %v131 = vadd.f32 0.0, %v130
      %v132 = vpop.f32.mrf.mxu0
      %133 = vdwg.mxu0
      %v134 = vadd.f32 %v103, %v131
      %v135 = vmax.f32 %v134, 0.0
      %vm136 = vcmask 253952
      %137 = vst.msk [vmem:[#allocation2] sm:$0x1] %vm136, %v135
      %s138 = scalar_lea.vmem %s4, %s96
      %139 = vst.msk [vmem:[%s138] sm:$0x1] %vm136, %v135
      %s140 = ssub.s32 7, %s96
      %v141 = vld [vmem:[#allocation3] sm:$0x1]
      %s142 = scalar_lea.vmem %s71, %s140
      %v143 = vld [vmem:[%s142] sm:$0x1]
      %v144 = vpack.c.bf16 %v141, %v141
      %v149 = vunpack.c.l.b16 %v91
      %v150 = vunpack.c.l.b16 %v92
      %v151 = vunpack.c.l.b16 %v93
      %v152 = vunpack.c.l.b16 %v94
      %v153 = vpack.c.b16 %v150, %v149
      %v154 = vpack.c.b16 %v152, %v151
      %v158 = vsel %vm117, %v144, 0
      %160 = vmatpush.bf16.msra.mxu0 0
      %161 = vmatpush.bf16.msra.mxu0 0
      %162 = vmatpush.bf16.msra.mxu0 0
      %163 = vmatpush.bf16.msra.mxu0 0
      %164 = vmatpush.bf16.msra.mxu0 0
      %165 = vmatpush.bf16.msra.mxu0 0
      %166 = vmatpush.bf16.msra.mxu0 %v154
      %167 = vmatpush.bf16.msra.mxu0 %v153
      %168 = vmatmul.bf16.gmra.mxu0 %v158
      %v169 = vpop.f32.mrf.mxu0
      %v170 = vadd.f32 0.0, %v169
      %v171 = vpop.f32.mrf.mxu0
      %172 = vdwg.mxu0
      %v173 = vadd.f32 %v143, %v170
      %v174 = vmax.f32 %v173, 0.0
      %175 = vst.msk [vmem:[#allocation3] sm:$0x1] %vm136, %v174
      %s176 = scalar_lea.vmem %s77, %s140
      %177 = vst.msk [vmem:[%s176] sm:$0x1] %vm136, %v174
    $region34: #{deepspeech_forward.12} parent=1 // loop_footer
      %s100 = sadd.s32 1, %s96
    $region35: #{deepspeech_forward.12} parent=1 // loop_footer_branch
      %95 = sbr.rel target = $region31
    $region36: #{deepspeech_forward.12} parent=1 // loop_exit
      _
    %s178 = ssub.s32 0, 0
    %p179 = scmp.lt.s32.totalorder %s178, 0
    %s180 = scalar_select %p179, %s178, 0
    %s181 = smul.addr %s180, 8
    %s182 = scalar_lea.vmem %s5, %s181
    // Predicated region
    $region37: #{deepspeech_forward.12} parent=1 // pred_check
      _
    $region38: #{deepspeech_forward.12} parent=1 // pred_check_branch
      %184 = sbr.rel (0) target = $region40
    $region39: #{deepspeech_forward.12} parent=1 // pred_region
      _
    $region40: #{deepspeech_forward.12} parent=1 // pred_fallthru
      _
    // Predicated region
    $region41: #{deepspeech_forward.12} parent=1 // pred_check
      _
    $region42: #{deepspeech_forward.12} parent=1 // pred_check_branch
      %186 = sbr.rel (0) target = $region44
    $region43: #{deepspeech_forward.12} parent=1 // pred_region
      %s187 = ssub.s32 0, 0
    $region44: #{deepspeech_forward.12} parent=1 // pred_fallthru
      _
    // Predicated region
    $region45: #{deepspeech_forward.12} parent=1 // pred_check
      _
    $region46: #{deepspeech_forward.12} parent=1 // pred_check_branch
      %189 = sbr.rel (0) target = $region48
    $region47: #{deepspeech_forward.12} parent=1 // pred_region
      _
    $region48: #{deepspeech_forward.12} parent=1 // pred_fallthru
      _
    // Predicated region
    $region49: #{deepspeech_forward.12} parent=1 // pred_check
      _
    $region50: #{deepspeech_forward.12} parent=1 // pred_check_branch
      %191 = sbr.rel (0) target = $region52
    $region51: #{deepspeech_forward.12} parent=1 // pred_region
      %s192 = ssub.s32 0, 0
      %p193 = scmp.lt.s32.totalorder %s192, 0
      %s194 = scalar_select %p193, %s192, 0
      %s195 = smul.addr %s194, 8
      %s196 = scalar_lea.vmem %s5, %s195
    $region52: #{deepspeech_forward.12} parent=1 // pred_fallthru
      _
    %197 = vsyncpa [#allocation5], 1
    %198 = vsyncpa [#allocation7], 1

// kernel: deepspeech_forward.8
$region0: #{deepspeech_forward.8}
  #allocation0 [shape = 'u32[]', space=smem, size = 0x4, offset = 0x4, fixed_abs, tag = 'smem constant byte address 0x4 - core index']
  #allocation1 [shape = 'u32[72,128]{1,0:T(1,128)}', space=vmem, size = 0x9000, scoped, tag = 'internal scratch']
  #allocation2 [shape = 'f32[8,32]{1,0:T(8,128)}', space=vmem, size = 0x1000, scoped, tag = 'scratch operand']
  %s0 = inlined_call_operand.vmem [shape: f32[8,32], index: 0, kind: input, shape index: {}]
  %s1 = inlined_call_operand.hbm [shape: bf16[32,32], index: 1, kind: input, shape index: {}]
  %s2 = inlined_call_operand.vmem [shape: f32[1,32], index: 2, kind: input, shape index: {}]
  %s3 = inlined_call_operand.vmem [shape: f32[8,32], index: 3, kind: output, shape index: {}]
  %s4 = sld [smem:[#allocation0]]
  $region34: #{deepspeech_forward.8} parent=0
    _
  %s6 = ssub.s32 1, %s4
  %s7 = scalar_select 0, %s6, %s4
  $region1: #{deepspeech_forward.8} parent=0
    #allocation3 [shape = 'u8[8192]{0}', space=vmem, size = 0x2000, scoped, tag = 'input window, operand 1, single buffered']
    #allocation4 [shape = 's32[1]{0}', space=sflag, size = 0x4, scoped, tag = 'scoped memory for deepspeech_forward.8']
    %8 = vsyncpa [#allocation4], 0
    // Predicated region
    $region2: #{deepspeech_forward.8} parent=1 // pred_check
      _
    $region3: #{deepspeech_forward.8} parent=1 // pred_check_branch
      %10 = sbr.rel (0) target = $region5
    $region4: #{deepspeech_forward.8} parent=1 // pred_region
      _
    $region5: #{deepspeech_forward.8} parent=1 // pred_fallthru
      _
    // Predicated region
    $region6: #{deepspeech_forward.8} parent=1 // pred_check
      _
    $region7: #{deepspeech_forward.8} parent=1 // pred_check_branch
      %12 = sbr.rel (0) target = $region9
    $region8: #{deepspeech_forward.8} parent=1 // pred_region
      %14 = vsyncadd [#allocation4], 0
      %s15 = sshll.u32 %s1, 4
      %s16 = int_to_ptr.hbm [resolvable:$true] %s15
      %s17 = sshll.u32 [#allocation3], 4
      %s18 = int_to_ptr.vmem [resolvable:$true] %s17
      %23 = dma.hbm_to_vmem [thread:$0]  %s16, 256, %s18, [#allocation4], 64, 64, 4
    $region9: #{deepspeech_forward.8} parent=1 // pred_fallthru
      _
    // Predicated region
    $region10: #{deepspeech_forward.8} parent=1 // pred_check
      _
    $region11: #{deepspeech_forward.8} parent=1 // pred_check_branch
      %25 = sbr.rel (0) target = $region13
    $region12: #{deepspeech_forward.8} parent=1 // pred_region
      _
    $region13: #{deepspeech_forward.8} parent=1 // pred_fallthru
      _
    // Predicated region
    $region14: #{deepspeech_forward.8} parent=1 // pred_check
      _
    $region15: #{deepspeech_forward.8} parent=1 // pred_check_branch
      %27 = sbr.rel (0) target = $region17
    $region16: #{deepspeech_forward.8} parent=1 // pred_region
      %29 = dma.done [#allocation4], 256
    $region17: #{deepspeech_forward.8} parent=1 // pred_fallthru
      _
    %p31 = scmp.eq.s32.totalorder 0, 0
    // Predicated region
    $region18: #{deepspeech_forward.8} parent=1 // pred_check
      %p32 = pneg %p31
    $region19: #{deepspeech_forward.8} parent=1 // pred_check_branch
      %34 = sbr.rel (%p32) target = $region21
    $region20: #{deepspeech_forward.8} parent=1 // pred_region
      %vm35 = vcmask 261120
      %36 = vst.msk [vmem:[#allocation2] sm:$0xff] %vm35, 0.0
    $region21: #{deepspeech_forward.8} parent=1 // pred_fallthru
      _
    %v37 = vld [vmem:[#allocation2] sm:$0xff]
    %v38 = vld [vmem:[%s0] sm:$0xff]
    %v39 = vpack.c.bf16 %v38, %v38
    %v40 = vld [vmem:[#allocation3] sm:$0xf]
    %v41 = vld [vmem:[#allocation3 + $0x4] sm:$0xf]
    %v42 = vld [vmem:[#allocation3 + $0x8] sm:$0xf]
    %v43 = vld [vmem:[#allocation3 + $0xc] sm:$0xf]
    %v48 = vunpack.c.l.b16 %v40
    %v49 = vunpack.c.l.b16 %v41
    %v50 = vunpack.c.l.b16 %v42
    %v51 = vunpack.c.l.b16 %v43
    %v52 = vpack.c.b16 %v49, %v48
    %v53 = vpack.c.b16 %v51, %v50
    %vm56 = vcmask 261120
    %v58 = vsel %vm56, %v39, 0
    %60 = vmatpush.bf16.msra.mxu0 0
    %61 = vmatpush.bf16.msra.mxu0 0
    %62 = vmatpush.bf16.msra.mxu0 0
    %63 = vmatpush.bf16.msra.mxu0 0
    %64 = vmatpush.bf16.msra.mxu0 0
    %65 = vmatpush.bf16.msra.mxu0 0
    %66 = vmatpush.bf16.msra.mxu0 %v53
    %67 = vmatpush.bf16.msra.mxu0 %v52
    %68 = vmatmul.bf16.gmra.mxu0 %v58
    %v69 = vpop.f32.mrf.mxu0
    %v70 = vadd.f32 0.0, %v69
    %v71 = vpop.f32.mrf.mxu0
    %72 = vdwg.mxu0
    %v73 = vadd.f32 %v37, %v70
    %74 = vst.msk [vmem:[#allocation2] sm:$0xff] %vm56, %v73
    // Predicated region
    $region22: #{deepspeech_forward.8} parent=1 // pred_check
      %p75 = pneg %p31
    $region23: #{deepspeech_forward.8} parent=1 // pred_check_branch
      %77 = sbr.rel (%p75) target = $region25
    $region24: #{deepspeech_forward.8} parent=1 // pred_region
      %v78 = vld [vmem:[#allocation2] sm:$0xff]
      %v79 = vld [vmem:[%s2] sm:$0x1]
      %v81 = vperm.slane %v79, 0
      %v83 = vadd.f32 %v78, %v81
      %v84 = vmax.f32 %v83, 0.0
      %v85 = vmin.f32 %v84, 20.0
      %86 = vst.msk [vmem:[%s3] sm:$0xff] %vm56, %v85
    $region25: #{deepspeech_forward.8} parent=1 // pred_fallthru
      _
    // Predicated region
    $region26: #{deepspeech_forward.8} parent=1 // pred_check
      _
    $region27: #{deepspeech_forward.8} parent=1 // pred_check_branch
      %88 = sbr.rel (0) target = $region29
    $region28: #{deepspeech_forward.8} parent=1 // pred_region
      _
    $region29: #{deepspeech_forward.8} parent=1 // pred_fallthru
      _
    // Predicated region
    $region30: #{deepspeech_forward.8} parent=1 // pred_check
      _
    $region31: #{deepspeech_forward.8} parent=1 // pred_check_branch
      %90 = sbr.rel (0) target = $region33
    $region32: #{deepspeech_forward.8} parent=1 // pred_region
      _
    $region33: #{deepspeech_forward.8} parent=1 // pred_fallthru
      _
    %91 = vsyncpa [#allocation4], 1

// kernel: deepspeech_forward.7
$region0: #{deepspeech_forward.7}
  #allocation0 [shape = 'u32[]', space=smem, size = 0x4, offset = 0x4, fixed_abs, tag = 'smem constant byte address 0x4 - core index']
  #allocation1 [shape = 'u32[72,128]{1,0:T(1,128)}', space=vmem, size = 0x9000, scoped, tag = 'internal scratch']
  #allocation2 [shape = 'f32[8,32]{1,0:T(8,128)}', space=vmem, size = 0x1000, scoped, tag = 'scratch operand']
  %s0 = inlined_call_operand.vmem [shape: f32[8,16], index: 0, kind: input, shape index: {}]
  %s1 = inlined_call_operand.hbm [shape: bf16[16,32], index: 1, kind: input, shape index: {}]
  %s2 = inlined_call_operand.vmem [shape: f32[1,32], index: 2, kind: input, shape index: {}]
  %s3 = inlined_call_operand.vmem [shape: f32[8,32], index: 3, kind: output, shape index: {}]
  %s4 = sld [smem:[#allocation0]]
  $region34: #{deepspeech_forward.7} parent=0
    _
  %s6 = ssub.s32 1, %s4
  %s7 = scalar_select 0, %s6, %s4
  $region1: #{deepspeech_forward.7} parent=0
    #allocation3 [shape = 'u8[4096]{0}', space=vmem, size = 0x1000, scoped, tag = 'input window, operand 1, single buffered']
    #allocation4 [shape = 's32[1]{0}', space=sflag, size = 0x4, scoped, tag = 'scoped memory for deepspeech_forward.7']
    %8 = vsyncpa [#allocation4], 0
    // Predicated region
    $region2: #{deepspeech_forward.7} parent=1 // pred_check
      _
    $region3: #{deepspeech_forward.7} parent=1 // pred_check_branch
      %10 = sbr.rel (0) target = $region5
    $region4: #{deepspeech_forward.7} parent=1 // pred_region
      _
    $region5: #{deepspeech_forward.7} parent=1 // pred_fallthru
      _
    // Predicated region
    $region6: #{deepspeech_forward.7} parent=1 // pred_check
      _
    $region7: #{deepspeech_forward.7} parent=1 // pred_check_branch
      %12 = sbr.rel (0) target = $region9
    $region8: #{deepspeech_forward.7} parent=1 // pred_region
      %14 = vsyncadd [#allocation4], 0
      %s15 = sshll.u32 %s1, 4
      %s16 = int_to_ptr.hbm [resolvable:$true] %s15
      %s17 = sshll.u32 [#allocation3], 4
      %s18 = int_to_ptr.vmem [resolvable:$true] %s17
      %23 = dma.hbm_to_vmem [thread:$0]  %s16, 128, %s18, [#allocation4], 64, 64, 4
    $region9: #{deepspeech_forward.7} parent=1 // pred_fallthru
      _
    // Predicated region
    $region10: #{deepspeech_forward.7} parent=1 // pred_check
      _
    $region11: #{deepspeech_forward.7} parent=1 // pred_check_branch
      %25 = sbr.rel (0) target = $region13
    $region12: #{deepspeech_forward.7} parent=1 // pred_region
      _
    $region13: #{deepspeech_forward.7} parent=1 // pred_fallthru
      _
    // Predicated region
    $region14: #{deepspeech_forward.7} parent=1 // pred_check
      _
    $region15: #{deepspeech_forward.7} parent=1 // pred_check_branch
      %27 = sbr.rel (0) target = $region17
    $region16: #{deepspeech_forward.7} parent=1 // pred_region
      %29 = dma.done [#allocation4], 128
    $region17: #{deepspeech_forward.7} parent=1 // pred_fallthru
      _
    %p31 = scmp.eq.s32.totalorder 0, 0
    // Predicated region
    $region18: #{deepspeech_forward.7} parent=1 // pred_check
      %p32 = pneg %p31
    $region19: #{deepspeech_forward.7} parent=1 // pred_check_branch
      %34 = sbr.rel (%p32) target = $region21
    $region20: #{deepspeech_forward.7} parent=1 // pred_region
      %vm35 = vcmask 261120
      %36 = vst.msk [vmem:[#allocation2] sm:$0xff] %vm35, 0.0
    $region21: #{deepspeech_forward.7} parent=1 // pred_fallthru
      _
    %v37 = vld [vmem:[#allocation2] sm:$0xff]
    %v38 = vld [vmem:[%s0] sm:$0xff]
    %v39 = vpack.c.bf16 %v38, %v38
    %v40 = vld [vmem:[#allocation3] sm:$0xf]
    %v41 = vld [vmem:[#allocation3 + $0x4] sm:$0xf]
    %v44 = vunpack.c.l.b16 %v40
    %v45 = vunpack.c.l.b16 %v41
    %v46 = vpack.c.b16 %v45, %v44
    %vm48 = vcmask 130048
    %v50 = vsel %vm48, %v39, 0
    %52 = vmatpush.bf16.msra.mxu0 0
    %53 = vmatpush.bf16.msra.mxu0 0
    %54 = vmatpush.bf16.msra.mxu0 0
    %55 = vmatpush.bf16.msra.mxu0 0
    %56 = vmatpush.bf16.msra.mxu0 0
    %57 = vmatpush.bf16.msra.mxu0 0
    %58 = vmatpush.bf16.msra.mxu0 0
    %59 = vmatpush.bf16.msra.mxu0 %v46
    %60 = vmatmul.bf16.gmra.mxu0 %v50
    %v61 = vpop.f32.mrf.mxu0
    %v62 = vadd.f32 0.0, %v61
    %v63 = vpop.f32.mrf.mxu0
    %64 = vdwg.mxu0
    %v65 = vadd.f32 %v37, %v62
    %vm66 = vcmask 261120
    %67 = vst.msk [vmem:[#allocation2] sm:$0xff] %vm66, %v65
    // Predicated region
    $region22: #{deepspeech_forward.7} parent=1 // pred_check
      %p68 = pneg %p31
    $region23: #{deepspeech_forward.7} parent=1 // pred_check_branch
      %70 = sbr.rel (%p68) target = $region25
    $region24: #{deepspeech_forward.7} parent=1 // pred_region
      %v71 = vld [vmem:[#allocation2] sm:$0xff]
      %v72 = vld [vmem:[%s2] sm:$0x1]
      %v74 = vperm.slane %v72, 0
      %v76 = vadd.f32 %v71, %v74
      %v77 = vmax.f32 %v76, 0.0
      %v78 = vmin.f32 %v77, 20.0
      %79 = vst.msk [vmem:[%s3] sm:$0xff] %vm66, %v78
    $region25: #{deepspeech_forward.7} parent=1 // pred_fallthru
      _
    // Predicated region
    $region26: #{deepspeech_forward.7} parent=1 // pred_check
      _
    $region27: #{deepspeech_forward.7} parent=1 // pred_check_branch
      %81 = sbr.rel (0) target = $region29
    $region28: #{deepspeech_forward.7} parent=1 // pred_region
      _
    $region29: #{deepspeech_forward.7} parent=1 // pred_fallthru
      _
    // Predicated region
    $region30: #{deepspeech_forward.7} parent=1 // pred_check
      _
    $region31: #{deepspeech_forward.7} parent=1 // pred_check_branch
      %83 = sbr.rel (0) target = $region33
    $region32: #{deepspeech_forward.7} parent=1 // pred_region
      _
    $region33: #{deepspeech_forward.7} parent=1 // pred_fallthru
      _
    %84 = vsyncpa [#allocation4], 1

// kernel: deepspeech_forward.13
$region0: #{deepspeech_forward.13}
  #allocation0 [shape = 'u32[]', space=smem, size = 0x4, offset = 0x4, fixed_abs, tag = 'smem constant byte address 0x4 - core index']
  #allocation1 [shape = 'u32[72,128]{1,0:T(1,128)}', space=vmem, size = 0x9000, scoped, tag = 'internal scratch']
  #allocation2 [shape = 'f32[8,32]{1,0:T(8,128)}', space=vmem, size = 0x1000, scoped, tag = 'scratch operand']
  #allocation3 [shape = 'f32[8,1]{1,0:T(8,128)}', space=vmem, size = 0x1000, scoped, tag = 'scratch operand']
  #allocation4 [shape = 'f32[1,1]{1,0:T(1,128)S(1)}', space=vmem, size = 0x200, scoped, tag = 'scoped memory for deepspeech_forward.13']
  %s0 = inlined_call_operand.vmem [shape: f32[8,32], index: 0, kind: input, shape index: {}]
  %s1 = inlined_call_operand.vmem [shape: f32[8,32], index: 1, kind: input, shape index: {}]
  %s2 = inlined_call_operand.hbm [shape: bf16[32,32], index: 2, kind: input, shape index: {}]
  %s3 = inlined_call_operand.vmem [shape: f32[1,32], index: 3, kind: input, shape index: {}]
  %s4 = inlined_call_operand.vmem [shape: f32[1,32], index: 4, kind: input, shape index: {}]
  %s5 = inlined_call_operand.<no memory space> [shape: f32[1,1], index: 5, kind: input, shape index: {}]
  %s6 = inlined_call_operand.vmem [shape: f32[8,1], index: 6, kind: output, shape index: {}]
  %s7 = sld [smem:[#allocation0]]
  $region54: #{deepspeech_forward.13} parent=0
    _
  %s9 = ssub.s32 1, %s7
  %s10 = scalar_select 0, %s9, %s7
  %v11 = vstv %s5
  %12 = vst [vmem:[#allocation4] sm:$0x1] %v11
  $region1: #{deepspeech_forward.13} parent=0
    #allocation5 [shape = 'u8[8192]{0}', space=vmem, size = 0x2000, scoped, tag = 'input window, operand 2, single buffered']
    #allocation6 [shape = 's32[1]{0}', space=sflag, size = 0x4, scoped, tag = 'scoped memory for deepspeech_forward.13']
    %13 = vsyncpa [#allocation6], 0
    // Predicated region
    $region2: #{deepspeech_forward.13} parent=1 // pred_check
      _
    $region3: #{deepspeech_forward.13} parent=1 // pred_check_branch
      %15 = sbr.rel (0) target = $region5
    $region4: #{deepspeech_forward.13} parent=1 // pred_region
      _
    $region5: #{deepspeech_forward.13} parent=1 // pred_fallthru
      _
    // Predicated region
    $region6: #{deepspeech_forward.13} parent=1 // pred_check
      _
    $region7: #{deepspeech_forward.13} parent=1 // pred_check_branch
      %17 = sbr.rel (0) target = $region9
    $region8: #{deepspeech_forward.13} parent=1 // pred_region
      _
    $region9: #{deepspeech_forward.13} parent=1 // pred_fallthru
      _
    // Predicated region
    $region10: #{deepspeech_forward.13} parent=1 // pred_check
      _
    $region11: #{deepspeech_forward.13} parent=1 // pred_check_branch
      %19 = sbr.rel (0) target = $region13
    $region12: #{deepspeech_forward.13} parent=1 // pred_region
      %21 = vsyncadd [#allocation6], 0
      %s22 = sshll.u32 %s2, 4
      %s23 = int_to_ptr.hbm [resolvable:$true] %s22
      %s24 = sshll.u32 [#allocation5], 4
      %s25 = int_to_ptr.vmem [resolvable:$true] %s24
      %30 = dma.hbm_to_vmem [thread:$0]  %s23, 256, %s25, [#allocation6], 64, 64, 4
    $region13: #{deepspeech_forward.13} parent=1 // pred_fallthru
      _
    // Predicated region
    $region14: #{deepspeech_forward.13} parent=1 // pred_check
      _
    $region15: #{deepspeech_forward.13} parent=1 // pred_check_branch
      %32 = sbr.rel (0) target = $region17
    $region16: #{deepspeech_forward.13} parent=1 // pred_region
      _
    $region17: #{deepspeech_forward.13} parent=1 // pred_fallthru
      _
    // Predicated region
    $region18: #{deepspeech_forward.13} parent=1 // pred_check
      _
    $region19: #{deepspeech_forward.13} parent=1 // pred_check_branch
      %34 = sbr.rel (0) target = $region21
    $region20: #{deepspeech_forward.13} parent=1 // pred_region
      _
    $region21: #{deepspeech_forward.13} parent=1 // pred_fallthru
      _
    // Predicated region
    $region22: #{deepspeech_forward.13} parent=1 // pred_check
      _
    $region23: #{deepspeech_forward.13} parent=1 // pred_check_branch
      %36 = sbr.rel (0) target = $region25
    $region24: #{deepspeech_forward.13} parent=1 // pred_region
      _
    $region25: #{deepspeech_forward.13} parent=1 // pred_fallthru
      _
    // Predicated region
    $region26: #{deepspeech_forward.13} parent=1 // pred_check
      _
    $region27: #{deepspeech_forward.13} parent=1 // pred_check_branch
      %38 = sbr.rel (0) target = $region29
    $region28: #{deepspeech_forward.13} parent=1 // pred_region
      %40 = dma.done [#allocation6], 256
    $region29: #{deepspeech_forward.13} parent=1 // pred_fallthru
      _
    %p42 = scmp.eq.s32.totalorder 0, 0
    %p43 = scmp.eq.s32.totalorder 0, 0
    %p44 = pnand %p42, %p43
    %p45 = pneg %p44
    // Predicated region
    $region30: #{deepspeech_forward.13} parent=1 // pred_check
      _
    $region31: #{deepspeech_forward.13} parent=1 // pred_check_branch
      %47 = sbr.rel (%p44) target = $region33
    $region32: #{deepspeech_forward.13} parent=1 // pred_region
      %vm48 = vcmask 7168
      %49 = vst.msk [vmem:[#allocation3] sm:$0xff] %vm48, 0.0
    $region33: #{deepspeech_forward.13} parent=1 // pred_fallthru
      _
    // Predicated region
    $region34: #{deepspeech_forward.13} parent=1 // pred_check
      %p50 = pneg %p43
    $region35: #{deepspeech_forward.13} parent=1 // pred_check_branch
      %52 = sbr.rel (%p50) target = $region37
    $region36: #{deepspeech_forward.13} parent=1 // pred_region
      %vm53 = vcmask 261120
      %54 = vst.msk [vmem:[#allocation2] sm:$0xff] %vm53, 0.0
    $region37: #{deepspeech_forward.13} parent=1 // pred_fallthru
      _
    %v55 = vld [vmem:[%s0] sm:$0xff]
    %v56 = vld [vmem:[%s1] sm:$0xff]
    %v57 = vadd.f32 %v55, %v56
    %v58 = vld [vmem:[#allocation2] sm:$0xff]
    %v59 = vpack.c.bf16 %v57, %v57
    %v60 = vld [vmem:[#allocation5] sm:$0xf]
    %v61 = vld [vmem:[#allocation5 + $0x4] sm:$0xf]
    %v62 = vld [vmem:[#allocation5 + $0x8] sm:$0xf]
    %v63 = vld [vmem:[#allocation5 + $0xc] sm:$0xf]
    %v68 = vunpack.c.l.b16 %v60
    %v69 = vunpack.c.l.b16 %v61
    %v70 = vunpack.c.l.b16 %v62
    %v71 = vunpack.c.l.b16 %v63
    %v72 = vpack.c.b16 %v69, %v68
    %v73 = vpack.c.b16 %v71, %v70
    %vm76 = vcmask 261120
    %v78 = vsel %vm76, %v59, 0
    %80 = vmatpush.bf16.msra.mxu0 0
    %81 = vmatpush.bf16.msra.mxu0 0
    %82 = vmatpush.bf16.msra.mxu0 0
    %83 = vmatpush.bf16.msra.mxu0 0
    %84 = vmatpush.bf16.msra.mxu0 0
    %85 = vmatpush.bf16.msra.mxu0 0
    %86 = vmatpush.bf16.msra.mxu0 %v73
    %87 = vmatpush.bf16.msra.mxu0 %v72
    %88 = vmatmul.bf16.gmra.mxu0 %v78
    %v89 = vpop.f32.mrf.mxu0
    %v90 = vadd.f32 0.0, %v89
    %v91 = vpop.f32.mrf.mxu0
    %92 = vdwg.mxu0
    %v93 = vadd.f32 %v58, %v90
    %94 = vst.msk [vmem:[#allocation2] sm:$0xff] %vm76, %v93
    // Predicated region
    $region38: #{deepspeech_forward.13} parent=1 // pred_check
      %p95 = pneg %p43
    $region39: #{deepspeech_forward.13} parent=1 // pred_check_branch
      %97 = sbr.rel (%p95) target = $region41
    $region40: #{deepspeech_forward.13} parent=1 // pred_region
      %v98 = vld [vmem:[#allocation2] sm:$0xff]
      %v99 = vld [vmem:[%s3] sm:$0x1]
      %v101 = vperm.slane %v99, 0
      %v103 = vadd.f32 %v98, %v101
      %v104 = vmax.f32 %v103, 0.0
      %v105 = vmin.f32 %v104, 20.0
      %v106 = vld [vmem:[#allocation3] sm:$0xff]
      %v107 = vld [vmem:[%s4] sm:$0x1]
      %v109 = vperm.slane %v107, 0
      %v111 = vmul.f32 %v105, %v109
      %v112 = vsel %vm76, %v111, 0.0
      %113 = vadd.xlane.f32.xlu0 %v112
      %v114 = vpop.xlane.xlu0 %113
      %v115 = vadd.f32 %v106, %v114
      %vm116 = vcmask 7168
      %117 = vst.msk [vmem:[#allocation3] sm:$0xff] %vm116, %v115
    $region41: #{deepspeech_forward.13} parent=1 // pred_fallthru
      _
    // Predicated region
    $region42: #{deepspeech_forward.13} parent=1 // pred_check
      _
    $region43: #{deepspeech_forward.13} parent=1 // pred_check_branch
      %119 = sbr.rel (%p44) target = $region45
    $region44: #{deepspeech_forward.13} parent=1 // pred_region
      %v120 = vld [vmem:[#allocation3] sm:$0xff]
      %v121 = vld [vmem:[#allocation4] sm:$0x1]
      %v123 = vperm.slane %v121, 0
      %v125 = vadd.f32 %v120, %v123
      %vm126 = vcmask 7168
      %127 = vst.msk [vmem:[%s6] sm:$0xff] %vm126, %v125
    $region45: #{deepspeech_forward.13} parent=1 // pred_fallthru
      _
    // Predicated region
    $region46: #{deepspeech_forward.13} parent=1 // pred_check
      _
    $region47: #{deepspeech_forward.13} parent=1 // pred_check_branch
      %129 = sbr.rel (0) target = $region49
    $region48: #{deepspeech_forward.13} parent=1 // pred_region
      _
    $region49: #{deepspeech_forward.13} parent=1 // pred_fallthru
      _
    // Predicated region
    $region50: #{deepspeech_forward.13} parent=1 // pred_check
      _
    $region51: #{deepspeech_forward.13} parent=1 // pred_check_branch
      %131 = sbr.rel (0) target = $region53
    $region52: #{deepspeech_forward.13} parent=1 // pred_region
      _
    $region53: #{deepspeech_forward.13} parent=1 // pred_fallthru
      _
    %132 = vsyncpa [#allocation6], 1

</llo_original>
